<compile_context>
chip_gen: v5e
topology: v5e:2x2
jax: 0.10.0
libtpu: 0.0.40
codegen_flags: <defaults>
</compile_context>

<pallas_src>
import jax
import jax.numpy as jnp
from jax import lax
from jax.experimental import pallas as pl
from jax.experimental.pallas import tpu as pltpu


# Chamfer tile sizes: object rows on the sublane axis, person columns on the
# lane axis (multiple of 128).
_TM_OBJ = 128
_TN_PER = 128


def _fused_phosa_kernel(bt_ref, w_ref, tmpl_ref, obj_ref, aff_ref,
                        vo_ref, vp_ref, cham_ref, cent_ref, col_min_ref):
    """Fused smplPHOSA forward.

    Inputs:
      bt_ref   (1, 82)      VMEM  stacked [shape | pose] blend coefficients
      w_ref    (3, 82, Vp)  VMEM  stacked blend weights, coordinate-major
      tmpl_ref (3, Vp)      VMEM  template vertices, coordinate-major
      obj_ref  (Vo, 3)      VMEM  raw object vertices (PyTorch layout)
      aff_ref  (2, 12)      SMEM  [A(3x3) row-major | b(3)] per mesh
                                  (row 0 = object, row 1 = person)
    Outputs:
      vo_ref   (Vo, 3)      transformed object vertices
      vp_ref   (3, Vp)      transformed person vertices (coordinate-major)
      cham_ref (1, 1)       chamfer ("inter") loss
      cent_ref (1, 1)       centroid loss
    Scratch:
      col_min_ref (1, Vp)   running per-person-vertex min squared distance
    """
    n_vo = obj_ref.shape[0]
    n_vp = tmpl_ref.shape[1]
    inv_vo = 1.0 / n_vo
    inv_vp = 1.0 / n_vp

    # ---- person: synthetic linear SMPL blend + folded affine, lane-dense ----
    # TODO(synk): real SMPL (learned LBS / joint regressor / pose blendshapes)
    # has no clean Pallas equivalent; a linear blend model with the same
    # (1,72)/(1,10) interface is used instead.
    bt = bt_ref[...]                                          # (1, 82)
    px = []
    for c in range(3):
        px.append(tmpl_ref[c:c + 1, :] +
                  jnp.dot(bt, w_ref[c],
                          preferred_element_type=jnp.float32))  # (1, Vp)
    p_cent = []
    for c in range(3):
        py = (aff_ref[1, 3 * c + 0] * px[0] +
              aff_ref[1, 3 * c + 1] * px[1] +
              aff_ref[1, 3 * c + 2] * px[2] +
              aff_ref[1, 9 + c])
        vp_ref[c:c + 1, :] = py
        p_cent.append(jnp.sum(py) * inv_vp)

    # ---- object transform + chamfer, fused per 128-row object block ----
    col_min_ref[...] = jnp.full((1, n_vp), jnp.inf, jnp.float32)
    n_ob = n_vo // _TM_OBJ
    n_pb = n_vp // _TN_PER

    def obj_block(ib, carry):
        cham_acc, os0, os1, os2 = carry
        r0 = pl.multiple_of(ib * _TM_OBJ, _TM_OBJ)

        # Folded affine y = A @ x + b as scalar FMAs on the VPU; each output
        # column is stored immediately (and summed for the centroid) so only
        # one output column is live at a time.
        ox0 = obj_ref[pl.ds(r0, _TM_OBJ), 0:1]                 # (TM, 1)
        ox1 = obj_ref[pl.ds(r0, _TM_OBJ), 1:2]
        ox2 = obj_ref[pl.ds(r0, _TM_OBJ), 2:3]
        osums = []
        for c in range(3):
            oy = (aff_ref[0, 3 * c + 0] * ox0 +
                  aff_ref[0, 3 * c + 1] * ox1 +
                  aff_ref[0, 3 * c + 2] * ox2 +
                  aff_ref[0, 9 + c])
            vo_ref[pl.ds(r0, _TM_OBJ), c:c + 1] = oy
            osums.append(jnp.sum(oy))

        def person_strip(jb, row_min):
            c0 = pl.multiple_of(jb * _TN_PER, _TN_PER)
            # Exact squared distances; the object column for each coordinate
            # is re-read from VMEM (bounds vreg pressure, loads are free here).
            d = None
            for c in range(3):
                oc = vo_ref[pl.ds(r0, _TM_OBJ), c:c + 1]       # (TM, 1)
                pr = vp_ref[c:c + 1, pl.ds(c0, _TN_PER)]       # (1, TN)
                t = oc - pr
                t = t * t                                      # (TM, TN)
                d = t if d is None else d + t
            # per-person running min (min over all object rows)
            col_min_ref[:, pl.ds(c0, _TN_PER)] = jnp.minimum(
                col_min_ref[:, pl.ds(c0, _TN_PER)],
                jnp.min(d, axis=0, keepdims=True))
            # per-object running min (min over all person columns)
            return jnp.minimum(row_min, jnp.min(d, axis=1, keepdims=True))

        row_min = lax.fori_loop(
            0, n_pb, person_strip,
            jnp.full((_TM_OBJ, 1), jnp.inf, jnp.float32),
            unroll=True)
        return (cham_acc + jnp.sum(row_min),
                os0 + osums[0], os1 + osums[1], os2 + osums[2])

    zero = jnp.zeros((), jnp.float32)
    cham_o_sum, os0, os1, os2 = lax.fori_loop(
        0, n_ob, obj_block, (zero, zero, zero, zero))

    # ---- centroid loss ----
    o_cent = (os0 * inv_vo, os1 * inv_vo, os2 * inv_vo)
    cent = ((p_cent[0] - o_cent[0]) ** 2 +
            (p_cent[1] - o_cent[1]) ** 2 +
            (p_cent[2] - o_cent[2]) ** 2) * (1.0 / 3.0)

    # ---- chamfer ("inter") loss ----
    cham_p_sum = jnp.sum(col_min_ref[...])
    cham = cham_o_sum * inv_vo + cham_p_sum * inv_vp

    cham_ref[...] = cham * jnp.ones((1, 1), jnp.float32)
    cent_ref[...] = cent * jnp.ones((1, 1), jnp.float32)


def _build_affine_row(rotation, translation, coord_scale):
    """A = diag(coord_scale) @ R^T,  b = A @ t  ->  flat (1, 12) row.

    Matches the reference `scale * ((x + t) @ R)` (row-vector convention),
    expressed column-wise as y = A x + b.
    """
    r = rotation.astype(jnp.float32)                       # (3, 3)
    t = translation.astype(jnp.float32).reshape(3, 1)      # (3, 1)
    a = coord_scale.astype(jnp.float32).reshape(3, 1) * r.T
    b = a @ t
    return jnp.concatenate([a.reshape(1, 9), b.reshape(1, 3)], axis=1)


class SmplPhosaPallas:
    """JAX/Pallas port of smplPHOSA.forward (inter + centroid losses).

    TODO(synk): the pytorch3d silhouette / ordinal-depth rendering losses have
    no Pallas equivalent and are skipped (same as loss weight == 0).
    """

    def __init__(self, verts_object, translations_person, rotations_person,
                 translations_object, rotations_object, person_pose,
                 person_shape, smpl_w_shape, smpl_w_pose, smpl_template,
                 int_scale_init=1.0, int_person_zscale=7.0 / 20.0):
        f32 = jnp.float32
        self.verts_object = verts_object.astype(f32)             # (Vo, 3)
        vo = self.verts_object.shape[0]
        vp = smpl_template.shape[1] // 3
        self.n_verts_object = vo
        self.n_verts_person = vp
        if vo % _TM_OBJ or vp % _TN_PER:
            raise ValueError(
                "vertex counts must be multiples of the chamfer tile sizes "
                f"({_TM_OBJ}, {_TN_PER})")

        # Stacked blend coefficients / weights (one logical matmul).
        self.blend_coeffs = jnp.concatenate(
            [person_shape.astype(f32), person_pose.astype(f32)], axis=1)  # (1, 82)
        w = jnp.concatenate(
            [smpl_w_shape.astype(f32), smpl_w_pose.astype(f32)], axis=0)  # (82, 3Vp)
        # flat index c*Vp + v  ->  coordinate-major (3, 82, Vp)
        # TODO(synk): for real SMPL sizes store these in bf16 + grid over Vp.
        self.blend_w = jnp.transpose(w.reshape(82, 3, vp), (1, 0, 2))
        self.template = smpl_template.astype(f32).reshape(3, vp)

        # Fold rotation + translation + intrinsic scale (+ person z-scale) into
        # one affine per mesh on the host (tiny one-time 3x3 math).
        scale_obj = jnp.full((3,), f32(int_scale_init))
        scale_per = f32(int_scale_init) * jnp.array(
            [1.0, 1.0, float(int_person_zscale)], f32)
        aff_obj = _build_affine_row(rotations_object[0],
                                    translations_object[0, 0], scale_obj)
        aff_per = _build_affine_row(rotations_person[0],
                                    translations_person[0, 0], scale_per)
        self.affine = jnp.concatenate([aff_obj, aff_per], axis=0)  # (2, 12)

        self._fused = pl.pallas_call(
            _fused_phosa_kernel,
            out_shape=(
                jax.ShapeDtypeStruct((vo, 3), f32),   # verts_object
                jax.ShapeDtypeStruct((3, vp), f32),   # verts_person (coord-major)
                jax.ShapeDtypeStruct((1, 1), f32),    # chamfer loss
                jax.ShapeDtypeStruct((1, 1), f32),    # centroid loss
            ),
            in_specs=[
                pl.BlockSpec(memory_space=pltpu.MemorySpace.VMEM),  # blend coeffs
                pl.BlockSpec(memory_space=pltpu.MemorySpace.VMEM),  # blend weights
                pl.BlockSpec(memory_space=pltpu.MemorySpace.VMEM),  # template
                pl.BlockSpec(memory_space=pltpu.MemorySpace.VMEM),  # object verts
                pl.BlockSpec(memory_space=pltpu.MemorySpace.SMEM),  # affine params
            ],
            out_specs=(
                pl.BlockSpec(memory_space=pltpu.MemorySpace.VMEM),
                pl.BlockSpec(memory_space=pltpu.MemorySpace.VMEM),
                pl.BlockSpec(memory_space=pltpu.MemorySpace.VMEM),
                pl.BlockSpec(memory_space=pltpu.MemorySpace.VMEM),
            ),
            scratch_shapes=[pltpu.VMEM((1, vp), f32)],
        )

    def forward(self, loss_weights):
        verts_object, verts_person, cham, cent = self._fused(
            self.blend_coeffs, self.blend_w, self.template,
            self.verts_object, self.affine)

        loss = jnp.zeros((), jnp.float32)
        if loss_weights["lw_ordinal_depth"] > 0:
            # TODO(synk): differentiable silhouette rendering + zbuf fragments
            # (pytorch3d rasterizer) has no Pallas equivalent; skipped.
            pass
        if loss_weights["lw_sil"] > 0:
            # TODO(synk): silhouette rendering has no Pallas equivalent; skipped.
            pass
        if loss_weights["lw_inter"] > 0:
            loss = loss + loss_weights["lw_inter"] * cham[0, 0]
        if loss_weights["lw_centroid"] > 0:
            loss = loss + loss_weights["lw_centroid"] * cent[0, 0]
        # verts_object is (Vo, 3); verts_person is coordinate-major (3, Vp).
        return loss, verts_object, verts_person


def _rot_z(angle):
    c, s = jnp.cos(angle), jnp.sin(angle)
    return jnp.array([[[c, -s, 0.0], [s, c, 0.0], [0.0, 0.0, 1.0]]],
                     jnp.float32)


if __name__ == "__main__":
    key = jax.random.PRNGKey(0)
    ks = jax.random.split(key, 8)

    Vo, Vp = 256, 256        # small synthetic vertex counts (multiples of 128)
    verts_object = 0.5 * jax.random.normal(ks[0], (Vo, 3), jnp.float32)
    person_pose = 0.1 * jax.random.normal(ks[1], (1, 72), jnp.float32)
    person_shape = 0.1 * jax.random.normal(ks[2], (1, 10), jnp.float32)
    smpl_w_shape = 0.01 * jax.random.normal(ks[3], (10, 3 * Vp), jnp.float32)
    smpl_w_pose = 0.01 * jax.random.normal(ks[4], (72, 3 * Vp), jnp.float32)
    smpl_template = 0.3 * jax.random.normal(ks[5], (1, 3 * Vp), jnp.float32)

    translations_person = jnp.array([[[0.10, -0.20, 2.50]]], jnp.float32)
    translations_object = jnp.array([[[-0.30, 0.05, 3.00]]], jnp.float32)
    rotations_person = _rot_z(0.3)
    rotations_object = _rot_z(-0.2)

    model = SmplPhosaPallas(
        verts_object=verts_object,
        translations_person=translations_person,
        rotations_person=rotations_person,
        translations_object=translations_object,
        rotations_object=rotations_object,
        person_pose=person_pose,
        person_shape=person_shape,
        smpl_w_shape=smpl_w_shape,
        smpl_w_pose=smpl_w_pose,
        smpl_template=smpl_template,
        int_scale_init=1.0,
        int_person_zscale=7.0 / 20.0,
    )

    loss_weights = {"lw_ordinal_depth": 0.0, "lw_sil": 0.0,
                    "lw_inter": 1.0, "lw_centroid": 0.5}

    loss, v_obj, v_per = model.forward(loss_weights)
    loss = jax.block_until_ready(loss)

    # --- reference check in plain JAX (PyTorch (B, V, 3) convention) ---
    o_ref = (verts_object + translations_object[0]) @ rotations_object[0]
    smpl_flat_ref = (smpl_template + person_shape @ smpl_w_shape
                     + person_pose @ smpl_w_pose)
    p_mesh_ref = smpl_flat_ref.reshape(3, Vp).T
    p_ref = (p_mesh_ref + translations_person[0]) @ rotations_person[0]
    p_ref = p_ref * jnp.array([1.0, 1.0, 7.0 / 20.0], jnp.float32)
    d_ref = jnp.sum((o_ref[:, None, :] - p_ref[None, :, :]) ** 2, axis=-1)
    cham_ref = jnp.mean(jnp.min(d_ref, axis=1)) + jnp.mean(jnp.min(d_ref, axis=0))
    cent_ref = jnp.mean((p_ref.mean(0) - o_ref.mean(0)) ** 2)
    loss_ref = (loss_weights["lw_inter"] * cham_ref
                + loss_weights["lw_centroid"] * cent_ref)

    assert jnp.allclose(v_obj, o_ref, atol=1e-3, rtol=1e-3)
    assert jnp.allclose(jnp.transpose(v_per), p_ref, atol=1e-3, rtol=1e-3)
    assert jnp.allclose(loss, loss_ref, atol=1e-3, rtol=1e-3)

    print("KERNEL_OK")
</pallas_src>

<mosaic_0001>
module attributes {stable_mosaic.version = 11 : i64} {
  func.func @_fused_phosa_kernel(%arg0: memref<1x82xf32, #tpu.memory_space<vmem>>, %arg1: memref<3x82x256xf32, #tpu.memory_space<vmem>>, %arg2: memref<3x256xf32, #tpu.memory_space<vmem>>, %arg3: memref<256x3xf32, #tpu.memory_space<vmem>>, %arg4: memref<2x12xf32, #tpu.memory_space<smem>>, %arg5: memref<256x3xf32, #tpu.memory_space<vmem>>, %arg6: memref<3x256xf32, #tpu.memory_space<vmem>>, %arg7: memref<1x1xf32, #tpu.memory_space<vmem>>, %arg8: memref<1x1xf32, #tpu.memory_space<vmem>>, %arg9: memref<1x256xf32, #tpu.memory_space<vmem>>) attributes {dimension_semantics = [], scalar_prefetch = 0 : i64, scratch_operands = 1 : i64, tpu.core_type = #tpu.core_type<tc>} {
    %c0 = arith.constant 0 : index
    %c0_0 = arith.constant 0 : index
    %0 = vector.load %arg0[%c0, %c0_0] : memref<1x82xf32, #tpu.memory_space<vmem>>, vector<1x82xf32>
    %c0_1 = arith.constant 0 : index
    %c0_2 = arith.constant 0 : index
    %1 = vector.load %arg2[%c0_1, %c0_2] : memref<3x256xf32, #tpu.memory_space<vmem>>, vector<1x256xf32>
    %c0_3 = arith.constant 0 : index
    %c0_4 = arith.constant 0 : index
    %c0_5 = arith.constant 0 : index
    %2 = vector.load %arg1[%c0_3, %c0_4, %c0_5] : memref<3x82x256xf32, #tpu.memory_space<vmem>>, vector<1x82x256xf32>
    %3 = vector.shape_cast %2 : vector<1x82x256xf32> to vector<82x256xf32>
    %cst = arith.constant dense<0.000000e+00> : vector<1x256xf32>
    %4 = tpu.matmul %0, %3, %cst {dimension_numbers = #tpu.dot_dimension_numbers<[1], [0], [0], [1], [0, 0, 1, 1], [], []>} : vector<1x82xf32>, vector<82x256xf32>, vector<1x256xf32> -> vector<1x256xf32>
    %5 = arith.addf %1, %4 : vector<1x256xf32>
    %c1 = arith.constant 1 : index
    %c0_6 = arith.constant 0 : index
    %6 = vector.load %arg2[%c1, %c0_6] : memref<3x256xf32, #tpu.memory_space<vmem>>, vector<1x256xf32>
    %c1_7 = arith.constant 1 : index
    %c0_8 = arith.constant 0 : index
    %c0_9 = arith.constant 0 : index
    %7 = vector.load %arg1[%c1_7, %c0_8, %c0_9] : memref<3x82x256xf32, #tpu.memory_space<vmem>>, vector<1x82x256xf32>
    %8 = vector.shape_cast %7 : vector<1x82x256xf32> to vector<82x256xf32>
    %cst_10 = arith.constant dense<0.000000e+00> : vector<1x256xf32>
    %9 = tpu.matmul %0, %8, %cst_10 {dimension_numbers = #tpu.dot_dimension_numbers<[1], [0], [0], [1], [0, 0, 1, 1], [], []>} : vector<1x82xf32>, vector<82x256xf32>, vector<1x256xf32> -> vector<1x256xf32>
    %10 = arith.addf %6, %9 : vector<1x256xf32>
    %c2 = arith.constant 2 : index
    %c0_11 = arith.constant 0 : index
    %11 = vector.load %arg2[%c2, %c0_11] : memref<3x256xf32, #tpu.memory_space<vmem>>, vector<1x256xf32>
    %c2_12 = arith.constant 2 : index
    %c0_13 = arith.constant 0 : index
    %c0_14 = arith.constant 0 : index
    %12 = vector.load %arg1[%c2_12, %c0_13, %c0_14] : memref<3x82x256xf32, #tpu.memory_space<vmem>>, vector<1x82x256xf32>
    %13 = vector.shape_cast %12 : vector<1x82x256xf32> to vector<82x256xf32>
    %cst_15 = arith.constant dense<0.000000e+00> : vector<1x256xf32>
    %14 = tpu.matmul %0, %13, %cst_15 {dimension_numbers = #tpu.dot_dimension_numbers<[1], [0], [0], [1], [0, 0, 1, 1], [], []>} : vector<1x82xf32>, vector<82x256xf32>, vector<1x256xf32> -> vector<1x256xf32>
    %15 = arith.addf %11, %14 : vector<1x256xf32>
    %c1_16 = arith.constant 1 : index
    %c0_17 = arith.constant 0 : index
    %16 = memref.load %arg4[%c1_16, %c0_17] : memref<2x12xf32, #tpu.memory_space<smem>>
    %17 = vector.broadcast %16 : f32 to vector<1x256xf32>
    %18 = arith.mulf %17, %5 : vector<1x256xf32>
    %c1_18 = arith.constant 1 : index
    %c1_19 = arith.constant 1 : index
    %19 = memref.load %arg4[%c1_18, %c1_19] : memref<2x12xf32, #tpu.memory_space<smem>>
    %20 = vector.broadcast %19 : f32 to vector<1x256xf32>
    %21 = arith.mulf %20, %10 : vector<1x256xf32>
    %22 = arith.addf %18, %21 : vector<1x256xf32>
    %c1_20 = arith.constant 1 : index
    %c2_21 = arith.constant 2 : index
    %23 = memref.load %arg4[%c1_20, %c2_21] : memref<2x12xf32, #tpu.memory_space<smem>>
    %24 = vector.broadcast %23 : f32 to vector<1x256xf32>
    %25 = arith.mulf %24, %15 : vector<1x256xf32>
    %26 = arith.addf %22, %25 : vector<1x256xf32>
    %c1_22 = arith.constant 1 : index
    %c9 = arith.constant 9 : index
    %27 = memref.load %arg4[%c1_22, %c9] : memref<2x12xf32, #tpu.memory_space<smem>>
    %28 = vector.broadcast %27 : f32 to vector<1x256xf32>
    %29 = arith.addf %26, %28 : vector<1x256xf32>
    %c0_23 = arith.constant 0 : index
    %c0_24 = arith.constant 0 : index
    %30 = vector.load %arg6[%c0_23, %c0_24] : memref<3x256xf32, #tpu.memory_space<vmem>>, vector<1x256xf32>
    tpu.vector_store %arg6[%c0_23, %c0_24], %29 {strides = array<i32>} : memref<3x256xf32, #tpu.memory_space<vmem>>, vector<1x256xf32>,
    %31 = vector.shape_cast %29 : vector<1x256xf32> to vector<1x1x256xf32>
    %cst_25 = arith.constant dense<0.000000e+00> : vector<1xf32>
    %32 = vector.multi_reduction <add>, %31, %cst_25 [1, 2] : vector<1x1x256xf32> to vector<1xf32>
    %33 = vector.shape_cast %32 : vector<1xf32> to vector<1x1x1xf32>
    %34 = vector.extract %33[0, 0, 0] : f32 from vector<1x1x1xf32>
    %cst_26 = arith.constant 3.906250e-03 : f32
    %35 = arith.mulf %34, %cst_26 : f32
    %c1_27 = arith.constant 1 : index
    %c3 = arith.constant 3 : index
    %36 = memref.load %arg4[%c1_27, %c3] : memref<2x12xf32, #tpu.memory_space<smem>>
    %37 = vector.broadcast %36 : f32 to vector<1x256xf32>
    %38 = arith.mulf %37, %5 : vector<1x256xf32>
    %c1_28 = arith.constant 1 : index
    %c4 = arith.constant 4 : index
    %39 = memref.load %arg4[%c1_28, %c4] : memref<2x12xf32, #tpu.memory_space<smem>>
    %40 = vector.broadcast %39 : f32 to vector<1x256xf32>
    %41 = arith.mulf %40, %10 : vector<1x256xf32>
    %42 = arith.addf %38, %41 : vector<1x256xf32>
    %c1_29 = arith.constant 1 : index
    %c5 = arith.constant 5 : index
    %43 = memref.load %arg4[%c1_29, %c5] : memref<2x12xf32, #tpu.memory_space<smem>>
    %44 = vector.broadcast %43 : f32 to vector<1x256xf32>
    %45 = arith.mulf %44, %15 : vector<1x256xf32>
    %46 = arith.addf %42, %45 : vector<1x256xf32>
    %c1_30 = arith.constant 1 : index
    %c10 = arith.constant 10 : index
    %47 = memref.load %arg4[%c1_30, %c10] : memref<2x12xf32, #tpu.memory_space<smem>>
    %48 = vector.broadcast %47 : f32 to vector<1x256xf32>
    %49 = arith.addf %46, %48 : vector<1x256xf32>
    %c1_31 = arith.constant 1 : index
    %c0_32 = arith.constant 0 : index
    %50 = vector.load %arg6[%c1_31, %c0_32] : memref<3x256xf32, #tpu.memory_space<vmem>>, vector<1x256xf32>
    tpu.vector_store %arg6[%c1_31, %c0_32], %49 {strides = array<i32>} : memref<3x256xf32, #tpu.memory_space<vmem>>, vector<1x256xf32>,
    %51 = vector.shape_cast %49 : vector<1x256xf32> to vector<1x1x256xf32>
    %cst_33 = arith.constant dense<0.000000e+00> : vector<1xf32>
    %52 = vector.multi_reduction <add>, %51, %cst_33 [1, 2] : vector<1x1x256xf32> to vector<1xf32>
    %53 = vector.shape_cast %52 : vector<1xf32> to vector<1x1x1xf32>
    %54 = vector.extract %53[0, 0, 0] : f32 from vector<1x1x1xf32>
    %cst_34 = arith.constant 3.906250e-03 : f32
    %55 = arith.mulf %54, %cst_34 : f32
    %c1_35 = arith.constant 1 : index
    %c6 = arith.constant 6 : index
    %56 = memref.load %arg4[%c1_35, %c6] : memref<2x12xf32, #tpu.memory_space<smem>>
    %57 = vector.broadcast %56 : f32 to vector<1x256xf32>
    %58 = arith.mulf %57, %5 : vector<1x256xf32>
    %c1_36 = arith.constant 1 : index
    %c7 = arith.constant 7 : index
    %59 = memref.load %arg4[%c1_36, %c7] : memref<2x12xf32, #tpu.memory_space<smem>>
    %60 = vector.broadcast %59 : f32 to vector<1x256xf32>
    %61 = arith.mulf %60, %10 : vector<1x256xf32>
    %62 = arith.addf %58, %61 : vector<1x256xf32>
    %c1_37 = arith.constant 1 : index
    %c8 = arith.constant 8 : index
    %63 = memref.load %arg4[%c1_37, %c8] : memref<2x12xf32, #tpu.memory_space<smem>>
    %64 = vector.broadcast %63 : f32 to vector<1x256xf32>
    %65 = arith.mulf %64, %15 : vector<1x256xf32>
    %66 = arith.addf %62, %65 : vector<1x256xf32>
    %c1_38 = arith.constant 1 : index
    %c11 = arith.constant 11 : index
    %67 = memref.load %arg4[%c1_38, %c11] : memref<2x12xf32, #tpu.memory_space<smem>>
    %68 = vector.broadcast %67 : f32 to vector<1x256xf32>
    %69 = arith.addf %66, %68 : vector<1x256xf32>
    %c2_39 = arith.constant 2 : index
    %c0_40 = arith.constant 0 : index
    %70 = vector.load %arg6[%c2_39, %c0_40] : memref<3x256xf32, #tpu.memory_space<vmem>>, vector<1x256xf32>
    tpu.vector_store %arg6[%c2_39, %c0_40], %69 {strides = array<i32>} : memref<3x256xf32, #tpu.memory_space<vmem>>, vector<1x256xf32>,
    %71 = vector.shape_cast %69 : vector<1x256xf32> to vector<1x1x256xf32>
    %cst_41 = arith.constant dense<0.000000e+00> : vector<1xf32>
    %72 = vector.multi_reduction <add>, %71, %cst_41 [1, 2] : vector<1x1x256xf32> to vector<1xf32>
    %73 = vector.shape_cast %72 : vector<1xf32> to vector<1x1x1xf32>
    %74 = vector.extract %73[0, 0, 0] : f32 from vector<1x1x1xf32>
    %cst_42 = arith.constant 3.906250e-03 : f32
    %75 = arith.mulf %74, %cst_42 : f32
    %cst_43 = arith.constant 0x7F800000 : f32
    %76 = vector.broadcast %cst_43 : f32 to vector<1x256xf32>
    %c0_44 = arith.constant 0 : index
    %c0_45 = arith.constant 0 : index
    %77 = vector.load %arg9[%c0_44, %c0_45] : memref<1x256xf32, #tpu.memory_space<vmem>>, vector<1x256xf32>
    tpu.vector_store %arg9[%c0_44, %c0_45], %76 {strides = array<i32>} : memref<1x256xf32, #tpu.memory_space<vmem>>, vector<1x256xf32>,
    %cst_46 = arith.constant 0.000000e+00 : f32
    %cst_47 = arith.constant 0.000000e+00 : f32
    %cst_48 = arith.constant 0.000000e+00 : f32
    %cst_49 = arith.constant 0.000000e+00 : f32
    %c0_i32 = arith.constant 0 : i32
    %c2_i32 = arith.constant 2 : i32
    %78 = arith.addi %c0_i32, %c2_i32 : i32
    %c1_i32 = arith.constant 1 : i32
    %79:4 = scf.for %arg10 = %c0_i32 to %78 step %c1_i32 iter_args(%arg11 = %cst_46, %arg12 = %cst_47, %arg13 = %cst_48, %arg14 = %cst_49) -> (f32, f32, f32, f32)  : i32 {
      %c128_i32 = arith.constant 128 : i32
      %108 = arith.muli %arg10, %c128_i32 : i32
      %109 = tpu.assume_multiple %108, 128 : i32
      %110 = arith.index_cast %109 : i32 to index
      %c0_66 = arith.constant 0 : index
      %111 = vector.load %arg3[%110, %c0_66] : memref<256x3xf32, #tpu.memory_space<vmem>>, vector<128x1xf32>
      %112 = arith.index_cast %109 : i32 to index
      %c1_67 = arith.constant 1 : index
      %113 = vector.load %arg3[%112, %c1_67] : memref<256x3xf32, #tpu.memory_space<vmem>>, vector<128x1xf32>
      %114 = arith.index_cast %109 : i32 to index
      %c2_68 = arith.constant 2 : index
      %115 = vector.load %arg3[%114, %c2_68] : memref<256x3xf32, #tpu.memory_space<vmem>>, vector<128x1xf32>
      %c0_69 = arith.constant 0 : index
      %c0_70 = arith.constant 0 : index
      %116 = memref.load %arg4[%c0_69, %c0_70] : memref<2x12xf32, #tpu.memory_space<smem>>
      %117 = vector.broadcast %116 : f32 to vector<128x1xf32>
      %118 = arith.mulf %117, %111 : vector<128x1xf32>
      %c0_71 = arith.constant 0 : index
      %c1_72 = arith.constant 1 : index
      %119 = memref.load %arg4[%c0_71, %c1_72] : memref<2x12xf32, #tpu.memory_space<smem>>
      %120 = vector.broadcast %119 : f32 to vector<128x1xf32>
      %121 = arith.mulf %120, %113 : vector<128x1xf32>
      %122 = arith.addf %118, %121 : vector<128x1xf32>
      %c0_73 = arith.constant 0 : index
      %c2_74 = arith.constant 2 : index
      %123 = memref.load %arg4[%c0_73, %c2_74] : memref<2x12xf32, #tpu.memory_space<smem>>
      %124 = vector.broadcast %123 : f32 to vector<128x1xf32>
      %125 = arith.mulf %124, %115 : vector<128x1xf32>
      %126 = arith.addf %122, %125 : vector<128x1xf32>
      %c0_75 = arith.constant 0 : index
      %c9_76 = arith.constant 9 : index
      %127 = memref.load %arg4[%c0_75, %c9_76] : memref<2x12xf32, #tpu.memory_space<smem>>
      %128 = vector.broadcast %127 : f32 to vector<128x1xf32>
      %129 = arith.addf %126, %128 : vector<128x1xf32>
      %130 = arith.index_cast %109 : i32 to index
      %c0_77 = arith.constant 0 : index
      %131 = vector.load %arg5[%130, %c0_77] : memref<256x3xf32, #tpu.memory_space<vmem>>, vector<128x1xf32>
      tpu.vector_store %arg5[%130, %c0_77], %129 {strides = array<i32>} : memref<256x3xf32, #tpu.memory_space<vmem>>, vector<128x1xf32>,
      %132 = vector.shape_cast %129 : vector<128x1xf32> to vector<1x128x1xf32>
      %cst_78 = arith.constant dense<0.000000e+00> : vector<1xf32>
      %133 = vector.multi_reduction <add>, %132, %cst_78 [1, 2] : vector<1x128x1xf32> to vector<1xf32>
      %134 = vector.shape_cast %133 : vector<1xf32> to vector<1x1x1xf32>
      %135 = vector.extract %134[0, 0, 0] : f32 from vector<1x1x1xf32>
      %c0_79 = arith.constant 0 : index
      %c3_80 = arith.constant 3 : index
      %136 = memref.load %arg4[%c0_79, %c3_80] : memref<2x12xf32, #tpu.memory_space<smem>>
      %137 = vector.broadcast %136 : f32 to vector<128x1xf32>
      %138 = arith.mulf %137, %111 : vector<128x1xf32>
      %c0_81 = arith.constant 0 : index
      %c4_82 = arith.constant 4 : index
      %139 = memref.load %arg4[%c0_81, %c4_82] : memref<2x12xf32, #tpu.memory_space<smem>>
      %140 = vector.broadcast %139 : f32 to vector<128x1xf32>
      %141 = arith.mulf %140, %113 : vector<128x1xf32>
      %142 = arith.addf %138, %141 : vector<128x1xf32>
      %c0_83 = arith.constant 0 : index
      %c5_84 = arith.constant 5 : index
      %143 = memref.load %arg4[%c0_83, %c5_84] : memref<2x12xf32, #tpu.memory_space<smem>>
      %144 = vector.broadcast %143 : f32 to vector<128x1xf32>
      %145 = arith.mulf %144, %115 : vector<128x1xf32>
      %146 = arith.addf %142, %145 : vector<128x1xf32>
      %c0_85 = arith.constant 0 : index
      %c10_86 = arith.constant 10 : index
      %147 = memref.load %arg4[%c0_85, %c10_86] : memref<2x12xf32, #tpu.memory_space<smem>>
      %148 = vector.broadcast %147 : f32 to vector<128x1xf32>
      %149 = arith.addf %146, %148 : vector<128x1xf32>
      %150 = arith.index_cast %109 : i32 to index
      %c1_87 = arith.constant 1 : index
      %151 = vector.load %arg5[%150, %c1_87] : memref<256x3xf32, #tpu.memory_space<vmem>>, vector<128x1xf32>
      tpu.vector_store %arg5[%150, %c1_87], %149 {strides = array<i32>} : memref<256x3xf32, #tpu.memory_space<vmem>>, vector<128x1xf32>,
      %152 = vector.shape_cast %149 : vector<128x1xf32> to vector<1x128x1xf32>
      %cst_88 = arith.constant dense<0.000000e+00> : vector<1xf32>
      %153 = vector.multi_reduction <add>, %152, %cst_88 [1, 2] : vector<1x128x1xf32> to vector<1xf32>
      %154 = vector.shape_cast %153 : vector<1xf32> to vector<1x1x1xf32>
      %155 = vector.extract %154[0, 0, 0] : f32 from vector<1x1x1xf32>
      %c0_89 = arith.constant 0 : index
      %c6_90 = arith.constant 6 : index
      %156 = memref.load %arg4[%c0_89, %c6_90] : memref<2x12xf32, #tpu.memory_space<smem>>
      %157 = vector.broadcast %156 : f32 to vector<128x1xf32>
      %158 = arith.mulf %157, %111 : vector<128x1xf32>
      %c0_91 = arith.constant 0 : index
      %c7_92 = arith.constant 7 : index
      %159 = memref.load %arg4[%c0_91, %c7_92] : memref<2x12xf32, #tpu.memory_space<smem>>
      %160 = vector.broadcast %159 : f32 to vector<128x1xf32>
      %161 = arith.mulf %160, %113 : vector<128x1xf32>
      %162 = arith.addf %158, %161 : vector<128x1xf32>
      %c0_93 = arith.constant 0 : index
      %c8_94 = arith.constant 8 : index
      %163 = memref.load %arg4[%c0_93, %c8_94] : memref<2x12xf32, #tpu.memory_space<smem>>
      %164 = vector.broadcast %163 : f32 to vector<128x1xf32>
      %165 = arith.mulf %164, %115 : vector<128x1xf32>
      %166 = arith.addf %162, %165 : vector<128x1xf32>
      %c0_95 = arith.constant 0 : index
      %c11_96 = arith.constant 11 : index
      %167 = memref.load %arg4[%c0_95, %c11_96] : memref<2x12xf32, #tpu.memory_space<smem>>
      %168 = vector.broadcast %167 : f32 to vector<128x1xf32>
      %169 = arith.addf %166, %168 : vector<128x1xf32>
      %170 = arith.index_cast %109 : i32 to index
      %c2_97 = arith.constant 2 : index
      %171 = vector.load %arg5[%170, %c2_97] : memref<256x3xf32, #tpu.memory_space<vmem>>, vector<128x1xf32>
      tpu.vector_store %arg5[%170, %c2_97], %169 {strides = array<i32>} : memref<256x3xf32, #tpu.memory_space<vmem>>, vector<128x1xf32>,
      %172 = vector.shape_cast %169 : vector<128x1xf32> to vector<1x128x1xf32>
      %cst_98 = arith.constant dense<0.000000e+00> : vector<1xf32>
      %173 = vector.multi_reduction <add>, %172, %cst_98 [1, 2] : vector<1x128x1xf32> to vector<1xf32>
      %174 = vector.shape_cast %173 : vector<1xf32> to vector<1x1x1xf32>
      %175 = vector.extract %174[0, 0, 0] : f32 from vector<1x1x1xf32>
      %cst_99 = arith.constant 0x7F800000 : f32
      %176 = vector.broadcast %cst_99 : f32 to vector<128x1xf32>
      %c0_i32_100 = arith.constant 0 : i32
      %c128_i32_101 = arith.constant 128 : i32
      %177 = arith.muli %c0_i32_100, %c128_i32_101 : i32
      %178 = tpu.assume_multiple %177, 128 : i32
      %179 = arith.index_cast %109 : i32 to index
      %c0_102 = arith.constant 0 : index
      %180 = vector.load %arg5[%179, %c0_102] : memref<256x3xf32, #tpu.memory_space<vmem>>, vector<128x1xf32>
      %c0_103 = arith.constant 0 : index
      %181 = arith.index_cast %178 : i32 to index
      %182 = vector.load %arg6[%c0_103, %181] : memref<3x256xf32, #tpu.memory_space<vmem>>, vector<1x128xf32>
      %183 = vector.broadcast %180 : vector<128x1xf32> to vector<128x128xf32>
      %184 = vector.broadcast %182 : vector<1x128xf32> to vector<128x128xf32>
      %185 = arith.subf %183, %184 : vector<128x128xf32>
      %186 = arith.mulf %185, %185 : vector<128x128xf32>
      %187 = arith.index_cast %109 : i32 to index
      %c1_104 = arith.constant 1 : index
      %188 = vector.load %arg5[%187, %c1_104] : memref<256x3xf32, #tpu.memory_space<vmem>>, vector<128x1xf32>
      %c1_105 = arith.constant 1 : index
      %189 = arith.index_cast %178 : i32 to index
      %190 = vector.load %arg6[%c1_105, %189] : memref<3x256xf32, #tpu.memory_space<vmem>>, vector<1x128xf32>
      %191 = vector.broadcast %188 : vector<128x1xf32> to vector<128x128xf32>
      %192 = vector.broadcast %190 : vector<1x128xf32> to vector<128x128xf32>
      %193 = arith.subf %191, %192 : vector<128x128xf32>
      %194 = arith.mulf %193, %193 : vector<128x128xf32>
      %195 = arith.addf %186, %194 : vector<128x128xf32>
      %196 = arith.index_cast %109 : i32 to index
      %c2_106 = arith.constant 2 : index
      %197 = vector.load %arg5[%196, %c2_106] : memref<256x3xf32, #tpu.memory_space<vmem>>, vector<128x1xf32>
      %c2_107 = arith.constant 2 : index
      %198 = arith.index_cast %178 : i32 to index
      %199 = vector.load %arg6[%c2_107, %198] : memref<3x256xf32, #tpu.memory_space<vmem>>, vector<1x128xf32>
      %200 = vector.broadcast %197 : vector<128x1xf32> to vector<128x128xf32>
      %201 = vector.broadcast %199 : vector<1x128xf32> to vector<128x128xf32>
      %202 = arith.subf %200, %201 : vector<128x128xf32>
      %203 = arith.mulf %202, %202 : vector<128x128xf32>
      %204 = arith.addf %195, %203 : vector<128x128xf32>
      %c0_108 = arith.constant 0 : index
      %205 = arith.index_cast %178 : i32 to index
      %206 = vector.load %arg9[%c0_108, %205] : memref<1x256xf32, #tpu.memory_space<vmem>>, vector<1x128xf32>
      %cst_109 = arith.constant dense<0x7F800000> : vector<128xf32>
      %207 = vector.multi_reduction <minimumf>, %204, %cst_109 [0] : vector<128x128xf32> to vector<128xf32>
      %208 = vector.shape_cast %207 : vector<128xf32> to vector<1x128xf32>
      %209 = arith.minimumf %206, %208 : vector<1x128xf32>
      %c0_110 = arith.constant 0 : index
      %210 = arith.index_cast %178 : i32 to index
      %211 = vector.load %arg9[%c0_110, %210] : memref<1x256xf32, #tpu.memory_space<vmem>>, vector<1x128xf32>
      tpu.vector_store %arg9[%c0_110, %210], %209 {strides = array<i32>} : memref<1x256xf32, #tpu.memory_space<vmem>>, vector<1x128xf32>,
      %cst_111 = arith.constant dense<0x7F800000> : vector<128xf32>
      %212 = vector.multi_reduction <minimumf>, %204, %cst_111 [1] : vector<128x128xf32> to vector<128xf32>
      %213 = vector.shape_cast %212 : vector<128xf32> to vector<128x1xf32>
      %214 = arith.minimumf %176, %213 : vector<128x1xf32>
      %c1_i32_112 = arith.constant 1 : i32
      %c128_i32_113 = arith.constant 128 : i32
      %215 = arith.muli %c1_i32_112, %c128_i32_113 : i32
      %216 = tpu.assume_multiple %215, 128 : i32
      %217 = arith.index_cast %109 : i32 to index
      %c0_114 = arith.constant 0 : index
      %218 = vector.load %arg5[%217, %c0_114] : memref<256x3xf32, #tpu.memory_space<vmem>>, vector<128x1xf32>
      %c0_115 = arith.constant 0 : index
      %219 = arith.index_cast %216 : i32 to index
      %220 = vector.load %arg6[%c0_115, %219] : memref<3x256xf32, #tpu.memory_space<vmem>>, vector<1x128xf32>
      %221 = vector.broadcast %218 : vector<128x1xf32> to vector<128x128xf32>
      %222 = vector.broadcast %220 : vector<1x128xf32> to vector<128x128xf32>
      %223 = arith.subf %221, %222 : vector<128x128xf32>
      %224 = arith.mulf %223, %223 : vector<128x128xf32>
      %225 = arith.index_cast %109 : i32 to index
      %c1_116 = arith.constant 1 : index
      %226 = vector.load %arg5[%225, %c1_116] : memref<256x3xf32, #tpu.memory_space<vmem>>, vector<128x1xf32>
      %c1_117 = arith.constant 1 : index
      %227 = arith.index_cast %216 : i32 to index
      %228 = vector.load %arg6[%c1_117, %227] : memref<3x256xf32, #tpu.memory_space<vmem>>, vector<1x128xf32>
      %229 = vector.broadcast %226 : vector<128x1xf32> to vector<128x128xf32>
      %230 = vector.broadcast %228 : vector<1x128xf32> to vector<128x128xf32>
      %231 = arith.subf %229, %230 : vector<128x128xf32>
      %232 = arith.mulf %231, %231 : vector<128x128xf32>
      %233 = arith.addf %224, %232 : vector<128x128xf32>
      %234 = arith.index_cast %109 : i32 to index
      %c2_118 = arith.constant 2 : index
      %235 = vector.load %arg5[%234, %c2_118] : memref<256x3xf32, #tpu.memory_space<vmem>>, vector<128x1xf32>
      %c2_119 = arith.constant 2 : index
      %236 = arith.index_cast %216 : i32 to index
      %237 = vector.load %arg6[%c2_119, %236] : memref<3x256xf32, #tpu.memory_space<vmem>>, vector<1x128xf32>
      %238 = vector.broadcast %235 : vector<128x1xf32> to vector<128x128xf32>
      %239 = vector.broadcast %237 : vector<1x128xf32> to vector<128x128xf32>
      %240 = arith.subf %238, %239 : vector<128x128xf32>
      %241 = arith.mulf %240, %240 : vector<128x128xf32>
      %242 = arith.addf %233, %241 : vector<128x128xf32>
      %c0_120 = arith.constant 0 : index
      %243 = arith.index_cast %216 : i32 to index
      %244 = vector.load %arg9[%c0_120, %243] : memref<1x256xf32, #tpu.memory_space<vmem>>, vector<1x128xf32>
      %cst_121 = arith.constant dense<0x7F800000> : vector<128xf32>
      %245 = vector.multi_reduction <minimumf>, %242, %cst_121 [0] : vector<128x128xf32> to vector<128xf32>
      %246 = vector.shape_cast %245 : vector<128xf32> to vector<1x128xf32>
      %247 = arith.minimumf %244, %246 : vector<1x128xf32>
      %c0_122 = arith.constant 0 : index
      %248 = arith.index_cast %216 : i32 to index
      %249 = vector.load %arg9[%c0_122, %248] : memref<1x256xf32, #tpu.memory_space<vmem>>, vector<1x128xf32>
      tpu.vector_store %arg9[%c0_122, %248], %247 {strides = array<i32>} : memref<1x256xf32, #tpu.memory_space<vmem>>, vector<1x128xf32>,
      %cst_123 = arith.constant dense<0x7F800000> : vector<128xf32>
      %250 = vector.multi_reduction <minimumf>, %242, %cst_123 [1] : vector<128x128xf32> to vector<128xf32>
      %251 = vector.shape_cast %250 : vector<128xf32> to vector<128x1xf32>
      %252 = arith.minimumf %214, %251 : vector<128x1xf32>
      %c2_i32_124 = arith.constant 2 : i32
      %253 = vector.shape_cast %252 : vector<128x1xf32> to vector<1x128x1xf32>
      %cst_125 = arith.constant dense<0.000000e+00> : vector<1xf32>
      %254 = vector.multi_reduction <add>, %253, %cst_125 [1, 2] : vector<1x128x1xf32> to vector<1xf32>
      %255 = vector.shape_cast %254 : vector<1xf32> to vector<1x1x1xf32>
      %256 = vector.extract %255[0, 0, 0] : f32 from vector<1x1x1xf32>
      %257 = arith.addf %arg11, %256 : f32
      %258 = arith.addf %arg12, %135 : f32
      %259 = arith.addf %arg13, %155 : f32
      %260 = arith.addf %arg14, %175 : f32
      scf.yield %257, %258, %259, %260 : f32, f32, f32, f32
    }
    %c2_i32_50 = arith.constant 2 : i32
    %cst_51 = arith.constant 3.906250e-03 : f32
    %80 = arith.mulf %79#1, %cst_51 : f32
    %cst_52 = arith.constant 3.906250e-03 : f32
    %81 = arith.mulf %79#2, %cst_52 : f32
    %cst_53 = arith.constant 3.906250e-03 : f32
    %82 = arith.mulf %79#3, %cst_53 : f32
    %83 = arith.subf %35, %80 : f32
    %84 = arith.mulf %83, %83 : f32
    %85 = arith.subf %55, %81 : f32
    %86 = arith.mulf %85, %85 : f32
    %87 = arith.addf %84, %86 : f32
    %88 = arith.subf %75, %82 : f32
    %89 = arith.mulf %88, %88 : f32
    %90 = arith.addf %87, %89 : f32
    %cst_54 = arith.constant 0.333333343 : f32
    %91 = arith.mulf %90, %cst_54 : f32
    %c0_55 = arith.constant 0 : index
    %c0_56 = arith.constant 0 : index
    %92 = vector.load %arg9[%c0_55, %c0_56] : memref<1x256xf32, #tpu.memory_space<vmem>>, vector<1x256xf32>
    %93 = vector.shape_cast %92 : vector<1x256xf32> to vector<1x1x256xf32>
    %cst_57 = arith.constant dense<0.000000e+00> : vector<1xf32>
    %94 = vector.multi_reduction <add>, %93, %cst_57 [1, 2] : vector<1x1x256xf32> to vector<1xf32>
    %95 = vector.shape_cast %94 : vector<1xf32> to vector<1x1x1xf32>
    %96 = vector.extract %95[0, 0, 0] : f32 from vector<1x1x1xf32>
    %cst_58 = arith.constant 3.906250e-03 : f32
    %97 = arith.mulf %79#0, %cst_58 : f32
    %cst_59 = arith.constant 3.906250e-03 : f32
    %98 = arith.mulf %96, %cst_59 : f32
    %99 = arith.addf %97, %98 : f32
    %cst_60 = arith.constant 1.000000e+00 : f32
    %100 = vector.broadcast %cst_60 : f32 to vector<1x1xf32>
    %101 = vector.broadcast %99 : f32 to vector<1x1xf32>
    %102 = arith.mulf %101, %100 : vector<1x1xf32>
    %c0_61 = arith.constant 0 : index
    %c0_62 = arith.constant 0 : index
    %103 = vector.load %arg7[%c0_61, %c0_62] : memref<1x1xf32, #tpu.memory_space<vmem>>, vector<1x1xf32>
    tpu.vector_store %arg7[%c0_61, %c0_62], %102 {strides = array<i32>} : memref<1x1xf32, #tpu.memory_space<vmem>>, vector<1x1xf32>,
    %cst_63 = arith.constant 1.000000e+00 : f32
    %104 = vector.broadcast %cst_63 : f32 to vector<1x1xf32>
    %105 = vector.broadcast %91 : f32 to vector<1x1xf32>
    %106 = arith.mulf %105, %104 : vector<1x1xf32>
    %c0_64 = arith.constant 0 : index
    %c0_65 = arith.constant 0 : index
    %107 = vector.load %arg8[%c0_64, %c0_65] : memref<1x1xf32, #tpu.memory_space<vmem>>, vector<1x1xf32>
    tpu.vector_store %arg8[%c0_64, %c0_65], %106 {strides = array<i32>} : memref<1x1xf32, #tpu.memory_space<vmem>>, vector<1x1xf32>,
    return
  }
}

</mosaic_0001>

<llo_original>
// kernel: tpu_custom_call.1
$region0: #{tpu_custom_call.1}
  #allocation0 [shape = 'u32[]', space=smem, size = 0x4, offset = 0x4, fixed_abs, tag = 'smem constant byte address 0x4 - core index']
  #allocation1 [shape = 'u32[72,128]{1,0:T(1,128)}', space=vmem, size = 0x9000, scoped, tag = 'internal scratch']
  #allocation2 [shape = 'f32[1,256]{1,0:T(1,128)}', space=vmem, size = 0x400, scoped, tag = 'scratch operand']
  %s0 = inlined_call_operand.vmem [shape: f32[1,82], index: 0, kind: input, shape index: {}]
  %s1 = inlined_call_operand.hbm [shape: f32[3,82,256], index: 1, kind: input, shape index: {}]
  %s2 = inlined_call_operand.vmem [shape: f32[3,256], index: 2, kind: input, shape index: {}]
  %s3 = inlined_call_operand.vmem [shape: f32[256,3], index: 3, kind: input, shape index: {}]
  %s4 = inlined_call_operand.vmem [shape: f32[2,12], index: 4, kind: input, shape index: {}]
  %s5 = inlined_call_operand.vmem [shape: f32[256,3], index: 5, kind: output, shape index: {0}]
  %s6 = inlined_call_operand.hbm [shape: f32[3,256], index: 6, kind: output, shape index: {1}]
  %s7 = inlined_call_operand.hbm [shape: f32[1,1], index: 7, kind: output, shape index: {2}]
  %s8 = inlined_call_operand.hbm [shape: f32[1,1], index: 8, kind: output, shape index: {3}]
  %9 = xla_tuple %s5, %s6, %s7, %s8
  %s10 = sld [smem:[#allocation0]]
  $region69: #{tpu_custom_call.1} parent=0
    _
  %s12 = ssub.s32 1, %s10
  %s13 = scalar_select 0, %s12, %s10
  $region1: #{tpu_custom_call.1} parent=0
    #allocation3 [shape = 'u8[270336]{0}', space=vmem, size = 0x42000, scoped, tag = 'input window, operand 1, single buffered']
    #allocation4 [shape = 's32[1]{0}', space=sflag, size = 0x4, scoped, tag = 'scoped memory for tpu_custom_call.1']
    #allocation5 [shape = 's32[1]{0}', space=sflag, size = 0x4, scoped, tag = 'scoped memory for tpu_custom_call.1']
    #allocation6 [shape = 's32[1]{0}', space=sflag, size = 0x4, scoped, tag = 'scoped memory for tpu_custom_call.1']
    #allocation7 [shape = 'u8[1024]{0}', space=smem, size = 0x400, scoped, tag = 'input window, operand 4, single buffered']
    #allocation8 [shape = 'u8[4096]{0}', space=vmem, size = 0x1000, scoped, tag = 'output window, operand 1, single buffered']
    #allocation9 [shape = 'u8[512]{0}', space=vmem, size = 0x400, scoped, tag = 'output window, operand 2, single buffered']
    #allocation10 [shape = 's32[1]{0}', space=sflag, size = 0x4, scoped, tag = 'scoped memory for tpu_custom_call.1']
    #allocation11 [shape = 'u8[512]{0}', space=vmem, size = 0x400, scoped, tag = 'output window, operand 3, single buffered']
    %14 = vsyncpa [#allocation4], 0
    %15 = vsyncpa [#allocation6], 0
    %16 = vsyncpa [#allocation5], 0
    %17 = vsyncpa [#allocation10], 0
    // Predicated region
    $region2: #{tpu_custom_call.1} parent=1 // pred_check
      _
    $region3: #{tpu_custom_call.1} parent=1 // pred_check_branch
      %19 = sbr.rel (0) target = $region5
    $region4: #{tpu_custom_call.1} parent=1 // pred_region
      _
    $region5: #{tpu_custom_call.1} parent=1 // pred_fallthru
      _
    // Predicated region
    $region6: #{tpu_custom_call.1} parent=1 // pred_check
      _
    $region7: #{tpu_custom_call.1} parent=1 // pred_check_branch
      %21 = sbr.rel (0) target = $region9
    $region8: #{tpu_custom_call.1} parent=1 // pred_region
      %23 = vsyncadd [#allocation4], 0
      %s24 = sshll.u32 %s1, 4
      %s25 = int_to_ptr.hbm [resolvable:$true] %s24
      %s26 = sshll.u32 [#allocation3], 4
      %s27 = int_to_ptr.vmem [resolvable:$true] %s26
      %32 = dma.hbm_to_vmem [thread:$0]  %s25, 8448, %s27, [#allocation4], 256, 256, 16
    $region9: #{tpu_custom_call.1} parent=1 // pred_fallthru
      _
    // Predicated region
    $region10: #{tpu_custom_call.1} parent=1 // pred_check
      _
    $region11: #{tpu_custom_call.1} parent=1 // pred_check_branch
      %34 = sbr.rel (0) target = $region13
    $region12: #{tpu_custom_call.1} parent=1 // pred_region
      _
    $region13: #{tpu_custom_call.1} parent=1 // pred_fallthru
      _
    // Predicated region
    $region14: #{tpu_custom_call.1} parent=1 // pred_check
      _
    $region15: #{tpu_custom_call.1} parent=1 // pred_check_branch
      %36 = sbr.rel (0) target = $region17
    $region16: #{tpu_custom_call.1} parent=1 // pred_region
      _
    $region17: #{tpu_custom_call.1} parent=1 // pred_fallthru
      _
    // Predicated region
    $region18: #{tpu_custom_call.1} parent=1 // pred_check
      _
    $region19: #{tpu_custom_call.1} parent=1 // pred_check_branch
      %38 = sbr.rel (0) target = $region21
    $region20: #{tpu_custom_call.1} parent=1 // pred_region
      %40 = vsyncadd [#allocation6], 0
      %s42 = sshll.u32 %s4, 4
      %s43 = int_to_ptr.vmem [resolvable:$true] %s42
      %45 = dma.vmem_to_smem %s43, 32, [#allocation7], [#allocation6]
    $region21: #{tpu_custom_call.1} parent=1 // pred_fallthru
      _
    // Predicated region
    $region22: #{tpu_custom_call.1} parent=1 // pred_check
      _
    $region23: #{tpu_custom_call.1} parent=1 // pred_check_branch
      %47 = sbr.rel (0) target = $region25
    $region24: #{tpu_custom_call.1} parent=1 // pred_region
      %49 = dma.done [#allocation4], 8448
    $region25: #{tpu_custom_call.1} parent=1 // pred_fallthru
      _
    // Predicated region
    $region26: #{tpu_custom_call.1} parent=1 // pred_check
      _
    $region27: #{tpu_custom_call.1} parent=1 // pred_check_branch
      %51 = sbr.rel (0) target = $region29
    $region28: #{tpu_custom_call.1} parent=1 // pred_region
      %53 = dma.done [#allocation6], 32
    $region29: #{tpu_custom_call.1} parent=1 // pred_fallthru
      _
    %54 = sfence
    %v55 = vld [vmem:[%s0] sm:$0x1]
    %v56 = vld [vmem:[%s2] ss:$4 sm:$0x3]
    %v57 = vld [vmem:[#allocation3] sm:$0xff]
    %v58 = vld [vmem:[#allocation3 + $0x8] sm:$0xff]
    %v59 = vld [vmem:[#allocation3 + $0x10] sm:$0xff]
    %v60 = vld [vmem:[#allocation3 + $0x18] sm:$0xff]
    %v61 = vld [vmem:[#allocation3 + $0x20] sm:$0xff]
    %v62 = vld [vmem:[#allocation3 + $0x28] sm:$0xff]
    %v63 = vld [vmem:[#allocation3 + $0x30] sm:$0xff]
    %v64 = vld [vmem:[#allocation3 + $0x38] sm:$0xff]
    %v65 = vld [vmem:[#allocation3 + $0x40] sm:$0xff]
    %v66 = vld [vmem:[#allocation3 + $0x48] sm:$0xff]
    %v67 = vld [vmem:[#allocation3 + $0x50] sm:$0xff]
    %v68 = vld [vmem:[#allocation3 + $0x58] sm:$0xff]
    %v69 = vld [vmem:[#allocation3 + $0x60] sm:$0xff]
    %v70 = vld [vmem:[#allocation3 + $0x68] sm:$0xff]
    %v71 = vld [vmem:[#allocation3 + $0x70] sm:$0xff]
    %v72 = vld [vmem:[#allocation3 + $0x78] sm:$0xff]
    %v73 = vld [vmem:[#allocation3 + $0x80] sm:$0xff]
    %v74 = vld [vmem:[#allocation3 + $0x88] sm:$0xff]
    %v75 = vld [vmem:[#allocation3 + $0x90] sm:$0xff]
    %v76 = vld [vmem:[#allocation3 + $0x98] sm:$0xff]
    %v77 = vld [vmem:[#allocation3 + $0xa0] sm:$0x3]
    %v78 = vld [vmem:[#allocation3 + $0xa8] sm:$0x3]
    %vm79 = vcmask 670720
    %v81 = vsel %vm79, %v55, 0
    %vm83 = vcmask 1041408
    %v85 = vsel %vm83, %v77, 0
    %v88 = vsel %vm83, %v78, 0
    %90 = vmatpush.msra.mxu0 0.0
    %91 = vmatpush.msra.mxu0 0.0
    %92 = vmatpush.msra.mxu0 0.0
    %93 = vmatpush.msra.mxu0 0.0
    %94 = vmatpush.msra.mxu0 0.0
    %95 = vmatpush.msra.mxu0 %v85
    %96 = vmatpush.msra.mxu0 %v75
    %97 = vmatpush.msra.mxu0 %v73
    %98 = vmatpush.msra.mxu0 %v71
    %99 = vmatpush.msra.mxu0 %v69
    %100 = vmatpush.msra.mxu0 %v67
    %101 = vmatpush.msra.mxu0 %v65
    %102 = vmatpush.msra.mxu0 %v63
    %103 = vmatpush.msra.mxu0 %v61
    %104 = vmatpush.msra.mxu0 %v59
    %105 = vmatpush.msra.mxu0 %v57
    %106 = vmatmul.f32.gmra.mxu0 %v81
    %v107 = vpop.f32.mrf.mxu0
    %v108 = vadd.f32 0.0, %v107
    %109 = vdwg.mxu0
    %110 = vmatpush.msra.mxu0 0.0
    %111 = vmatpush.msra.mxu0 0.0
    %112 = vmatpush.msra.mxu0 0.0
    %113 = vmatpush.msra.mxu0 0.0
    %114 = vmatpush.msra.mxu0 0.0
    %115 = vmatpush.msra.mxu0 %v88
    %116 = vmatpush.msra.mxu0 %v76
    %117 = vmatpush.msra.mxu0 %v74
    %118 = vmatpush.msra.mxu0 %v72
    %119 = vmatpush.msra.mxu0 %v70
    %120 = vmatpush.msra.mxu0 %v68
    %121 = vmatpush.msra.mxu0 %v66
    %122 = vmatpush.msra.mxu0 %v64
    %123 = vmatpush.msra.mxu0 %v62
    %124 = vmatpush.msra.mxu0 %v60
    %125 = vmatpush.msra.mxu0 %v58
    %126 = vmatmul.f32.gmra.mxu0 %v81
    %v127 = vpop.f32.mrf.mxu0
    %v128 = vadd.f32 0.0, %v127
    %129 = vdwg.mxu0
    %v132 = vrot.slane %v128, 7
    %vm133 = vcmask 1040384
    %v134 = vsel %vm133, %v108, %v132
    %v136 = vadd.f32 %v56, %v134
    %s137 = scalar_lea.vmem %s2, 1
    %v138 = vld [vmem:[%s137] ss:$4 sm:$0x3]
    %s139 = scalar_lea.vmem [#allocation3], 176
    %v140 = vld [vmem:[%s139] sm:$0xff]
    %v141 = vld [vmem:[%s139 + $0x8] sm:$0xff]
    %v142 = vld [vmem:[%s139 + $0x10] sm:$0xff]
    %v143 = vld [vmem:[%s139 + $0x18] sm:$0xff]
    %v144 = vld [vmem:[%s139 + $0x20] sm:$0xff]
    %v145 = vld [vmem:[%s139 + $0x28] sm:$0xff]
    %v146 = vld [vmem:[%s139 + $0x30] sm:$0xff]
    %v147 = vld [vmem:[%s139 + $0x38] sm:$0xff]
    %v148 = vld [vmem:[%s139 + $0x40] sm:$0xff]
    %v149 = vld [vmem:[%s139 + $0x48] sm:$0xff]
    %v150 = vld [vmem:[%s139 + $0x50] sm:$0xff]
    %v151 = vld [vmem:[%s139 + $0x58] sm:$0xff]
    %v152 = vld [vmem:[%s139 + $0x60] sm:$0xff]
    %v153 = vld [vmem:[%s139 + $0x68] sm:$0xff]
    %v154 = vld [vmem:[%s139 + $0x70] sm:$0xff]
    %v155 = vld [vmem:[%s139 + $0x78] sm:$0xff]
    %v156 = vld [vmem:[%s139 + $0x80] sm:$0xff]
    %v157 = vld [vmem:[%s139 + $0x88] sm:$0xff]
    %v158 = vld [vmem:[%s139 + $0x90] sm:$0xff]
    %v159 = vld [vmem:[%s139 + $0x98] sm:$0xff]
    %v160 = vld [vmem:[%s139 + $0xa0] sm:$0x3]
    %v161 = vld [vmem:[%s139 + $0xa8] sm:$0x3]
    %v163 = vsel %vm83, %v160, 0
    %v166 = vsel %vm83, %v161, 0
    %168 = vmatpush.msra.mxu0 0.0
    %169 = vmatpush.msra.mxu0 0.0
    %170 = vmatpush.msra.mxu0 0.0
    %171 = vmatpush.msra.mxu0 0.0
    %172 = vmatpush.msra.mxu0 0.0
    %173 = vmatpush.msra.mxu0 %v163
    %174 = vmatpush.msra.mxu0 %v158
    %175 = vmatpush.msra.mxu0 %v156
    %176 = vmatpush.msra.mxu0 %v154
    %177 = vmatpush.msra.mxu0 %v152
    %178 = vmatpush.msra.mxu0 %v150
    %179 = vmatpush.msra.mxu0 %v148
    %180 = vmatpush.msra.mxu0 %v146
    %181 = vmatpush.msra.mxu0 %v144
    %182 = vmatpush.msra.mxu0 %v142
    %183 = vmatpush.msra.mxu0 %v140
    %184 = vmatmul.f32.gmra.mxu0 %v81
    %v185 = vpop.f32.mrf.mxu0
    %v186 = vadd.f32 0.0, %v185
    %187 = vdwg.mxu0
    %188 = vmatpush.msra.mxu0 0.0
    %189 = vmatpush.msra.mxu0 0.0
    %190 = vmatpush.msra.mxu0 0.0
    %191 = vmatpush.msra.mxu0 0.0
    %192 = vmatpush.msra.mxu0 0.0
    %193 = vmatpush.msra.mxu0 %v166
    %194 = vmatpush.msra.mxu0 %v159
    %195 = vmatpush.msra.mxu0 %v157
    %196 = vmatpush.msra.mxu0 %v155
    %197 = vmatpush.msra.mxu0 %v153
    %198 = vmatpush.msra.mxu0 %v151
    %199 = vmatpush.msra.mxu0 %v149
    %200 = vmatpush.msra.mxu0 %v147
    %201 = vmatpush.msra.mxu0 %v145
    %202 = vmatpush.msra.mxu0 %v143
    %203 = vmatpush.msra.mxu0 %v141
    %204 = vmatmul.f32.gmra.mxu0 %v81
    %v205 = vpop.f32.mrf.mxu0
    %v206 = vadd.f32 0.0, %v205
    %207 = vdwg.mxu0
    %v210 = vrot.slane %v206, 7
    %v211 = vsel %vm133, %v186, %v210
    %v213 = vadd.f32 %v138, %v211
    %s214 = scalar_lea.vmem %s2, 2
    %v215 = vld [vmem:[%s214] ss:$4 sm:$0x3]
    %s216 = scalar_lea.vmem [#allocation3], 352
    %v217 = vld [vmem:[%s216] sm:$0xff]
    %v218 = vld [vmem:[%s216 + $0x8] sm:$0xff]
    %v219 = vld [vmem:[%s216 + $0x10] sm:$0xff]
    %v220 = vld [vmem:[%s216 + $0x18] sm:$0xff]
    %v221 = vld [vmem:[%s216 + $0x20] sm:$0xff]
    %v222 = vld [vmem:[%s216 + $0x28] sm:$0xff]
    %v223 = vld [vmem:[%s216 + $0x30] sm:$0xff]
    %v224 = vld [vmem:[%s216 + $0x38] sm:$0xff]
    %v225 = vld [vmem:[%s216 + $0x40] sm:$0xff]
    %v226 = vld [vmem:[%s216 + $0x48] sm:$0xff]
    %v227 = vld [vmem:[%s216 + $0x50] sm:$0xff]
    %v228 = vld [vmem:[%s216 + $0x58] sm:$0xff]
    %v229 = vld [vmem:[%s216 + $0x60] sm:$0xff]
    %v230 = vld [vmem:[%s216 + $0x68] sm:$0xff]
    %v231 = vld [vmem:[%s216 + $0x70] sm:$0xff]
    %v232 = vld [vmem:[%s216 + $0x78] sm:$0xff]
    %v233 = vld [vmem:[%s216 + $0x80] sm:$0xff]
    %v234 = vld [vmem:[%s216 + $0x88] sm:$0xff]
    %v235 = vld [vmem:[%s216 + $0x90] sm:$0xff]
    %v236 = vld [vmem:[%s216 + $0x98] sm:$0xff]
    %v237 = vld [vmem:[%s216 + $0xa0] sm:$0x3]
    %v238 = vld [vmem:[%s216 + $0xa8] sm:$0x3]
    %v240 = vsel %vm83, %v237, 0
    %v243 = vsel %vm83, %v238, 0
    %245 = vmatpush.msra.mxu0 0.0
    %246 = vmatpush.msra.mxu0 0.0
    %247 = vmatpush.msra.mxu0 0.0
    %248 = vmatpush.msra.mxu0 0.0
    %249 = vmatpush.msra.mxu0 0.0
    %250 = vmatpush.msra.mxu0 %v240
    %251 = vmatpush.msra.mxu0 %v235
    %252 = vmatpush.msra.mxu0 %v233
    %253 = vmatpush.msra.mxu0 %v231
    %254 = vmatpush.msra.mxu0 %v229
    %255 = vmatpush.msra.mxu0 %v227
    %256 = vmatpush.msra.mxu0 %v225
    %257 = vmatpush.msra.mxu0 %v223
    %258 = vmatpush.msra.mxu0 %v221
    %259 = vmatpush.msra.mxu0 %v219
    %260 = vmatpush.msra.mxu0 %v217
    %261 = vmatmul.f32.gmra.mxu0 %v81
    %v262 = vpop.f32.mrf.mxu0
    %v263 = vadd.f32 0.0, %v262
    %264 = vdwg.mxu0
    %265 = vmatpush.msra.mxu0 0.0
    %266 = vmatpush.msra.mxu0 0.0
    %267 = vmatpush.msra.mxu0 0.0
    %268 = vmatpush.msra.mxu0 0.0
    %269 = vmatpush.msra.mxu0 0.0
    %270 = vmatpush.msra.mxu0 %v243
    %271 = vmatpush.msra.mxu0 %v236
    %272 = vmatpush.msra.mxu0 %v234
    %273 = vmatpush.msra.mxu0 %v232
    %274 = vmatpush.msra.mxu0 %v230
    %275 = vmatpush.msra.mxu0 %v228
    %276 = vmatpush.msra.mxu0 %v226
    %277 = vmatpush.msra.mxu0 %v224
    %278 = vmatpush.msra.mxu0 %v222
    %279 = vmatpush.msra.mxu0 %v220
    %280 = vmatpush.msra.mxu0 %v218
    %281 = vmatmul.f32.gmra.mxu0 %v81
    %v282 = vpop.f32.mrf.mxu0
    %v283 = vadd.f32 0.0, %v282
    %284 = vdwg.mxu0
    %v287 = vrot.slane %v283, 7
    %v288 = vsel %vm133, %v263, %v287
    %v290 = vadd.f32 %v215, %v288
    %s291 = sld [smem:[#allocation7 + $0x80]]
    %v292 = vstv %s291
    %v293 = vmul.f32 %v292, %v136
    %s294 = sld [smem:[#allocation7 + $0x81]]
    %v295 = vstv %s294
    %v296 = vmul.f32 %v295, %v213
    %v297 = vadd.f32 %v293, %v296
    %s298 = sld [smem:[#allocation7 + $0x82]]
    %v299 = vstv %s298
    %v300 = vmul.f32 %v299, %v290
    %v301 = vadd.f32 %v297, %v300
    %s302 = sld [smem:[#allocation7 + $0x89]]
    %v303 = vstv %s302
    %v304 = vadd.f32 %v301, %v303
    %v305 = vlaneseq
    %vm306 = vcmp.ge.s32.totalorder %v305, 0
    %vm307 = vcmp.lt.s32.totalorder %v305, 256
    %vm308 = vmand %vm306, %vm307
    %309 = vst.msk [vmem:[#allocation8] ss:$4 sm:$0x3] %vm308, %v304
    %v311 = vperm.slane %v304, 0
    %v312 = vperm.slane %v304, 1
    %v315 = vsel %vm133, %v311, 0.0
    %v316 = vsel %vm133, %v312, 0.0
    %v317 = vadd.f32 %v315, %v316
    %318 = vadd.xlane.f32.xlu0 %v317
    %v319 = vpop.xlane.xlu0 %318
    %v320 = vrot.slane %v319, 4
    %v321 = vadd.f32 %v319, %v320
    %v322 = vrot.slane %v321, 2
    %v323 = vadd.f32 %v321, %v322
    %v324 = vrot.slane %v323, 1
    %v325 = vadd.f32 %v323, %v324
    %s326 = vtos %v325
    %s327 = smul.f32 %s326, 0.00390625
    %s328 = sld [smem:[#allocation7 + $0x83]]
    %v329 = vstv %s328
    %v330 = vmul.f32 %v329, %v136
    %s331 = sld [smem:[#allocation7 + $0x84]]
    %v332 = vstv %s331
    %v333 = vmul.f32 %v332, %v213
    %v334 = vadd.f32 %v330, %v333
    %s335 = sld [smem:[#allocation7 + $0x85]]
    %v336 = vstv %s335
    %v337 = vmul.f32 %v336, %v290
    %v338 = vadd.f32 %v334, %v337
    %s339 = sld [smem:[#allocation7 + $0x8a]]
    %v340 = vstv %s339
    %v341 = vadd.f32 %v338, %v340
    %s342 = scalar_lea.vmem [#allocation8], 1
    %343 = vst.msk [vmem:[%s342] ss:$4 sm:$0x3] %vm308, %v341
    %v345 = vperm.slane %v341, 0
    %v346 = vperm.slane %v341, 1
    %v349 = vsel %vm133, %v345, 0.0
    %v350 = vsel %vm133, %v346, 0.0
    %v351 = vadd.f32 %v349, %v350
    %352 = vadd.xlane.f32.xlu0 %v351
    %v353 = vpop.xlane.xlu0 %352
    %v354 = vrot.slane %v353, 4
    %v355 = vadd.f32 %v353, %v354
    %v356 = vrot.slane %v355, 2
    %v357 = vadd.f32 %v355, %v356
    %v358 = vrot.slane %v357, 1
    %v359 = vadd.f32 %v357, %v358
    %s360 = vtos %v359
    %s361 = smul.f32 %s360, 0.00390625
    %s362 = sld [smem:[#allocation7 + $0x86]]
    %v363 = vstv %s362
    %v364 = vmul.f32 %v363, %v136
    %s365 = sld [smem:[#allocation7 + $0x87]]
    %v366 = vstv %s365
    %v367 = vmul.f32 %v366, %v213
    %v368 = vadd.f32 %v364, %v367
    %s369 = sld [smem:[#allocation7 + $0x88]]
    %v370 = vstv %s369
    %v371 = vmul.f32 %v370, %v290
    %v372 = vadd.f32 %v368, %v371
    %s373 = sld [smem:[#allocation7 + $0x8b]]
    %v374 = vstv %s373
    %v375 = vadd.f32 %v372, %v374
    %s376 = scalar_lea.vmem [#allocation8], 2
    %377 = vst.msk [vmem:[%s376] ss:$4 sm:$0x3] %vm308, %v375
    %v379 = vperm.slane %v375, 0
    %v380 = vperm.slane %v375, 1
    %v383 = vsel %vm133, %v379, 0.0
    %v384 = vsel %vm133, %v380, 0.0
    %v385 = vadd.f32 %v383, %v384
    %386 = vadd.xlane.f32.xlu0 %v385
    %v387 = vpop.xlane.xlu0 %386
    %v388 = vrot.slane %v387, 4
    %v389 = vadd.f32 %v387, %v388
    %v390 = vrot.slane %v389, 2
    %v391 = vadd.f32 %v389, %v390
    %v392 = vrot.slane %v391, 1
    %v393 = vadd.f32 %v391, %v392
    %s394 = vtos %v393
    %s395 = smul.f32 %s394, 0.00390625
    %396 = vst.msk [vmem:[#allocation2] sm:$0x3] %vm308, inf
    loop: start=0, step=1, limit=2
    $region30: #{tpu_custom_call.1} parent=1 // loop_pre_header
      _
    $region31: #{tpu_custom_call.1} parent=1 // loop_header
      %s398 = sphi 0, %s402
      %p399 = scmp.ge.s32.totalorder %s398, 2
      %s403 = sphi 0.0, %s2309
      %s404 = sphi 0.0, %s2310
      %s405 = sphi 0.0, %s2311
      %s406 = sphi 0.0, %s2312
    $region32: #{tpu_custom_call.1} parent=1 // loop_header_branch
      %401 = sbr.rel (%p399) target = $region36
    $region33: #{tpu_custom_call.1} parent=1 // loop_body
      %s407 = smul.u32 %s398, 128
      %s408 = scalar_lea.vmem %s3, %s407
      %v409 = vld [vmem:[%s408] sm:$0xff]
      %v410 = vld [vmem:[%s408 + $0x8] sm:$0xff]
      %v411 = vld [vmem:[%s408 + $0x10] sm:$0xff]
      %v412 = vld [vmem:[%s408 + $0x18] sm:$0xff]
      %v413 = vld [vmem:[%s408 + $0x20] sm:$0xff]
      %v414 = vld [vmem:[%s408 + $0x28] sm:$0xff]
      %v415 = vld [vmem:[%s408 + $0x30] sm:$0xff]
      %v416 = vld [vmem:[%s408 + $0x38] sm:$0xff]
      %v417 = vld [vmem:[%s408 + $0x40] sm:$0xff]
      %v418 = vld [vmem:[%s408 + $0x48] sm:$0xff]
      %v419 = vld [vmem:[%s408 + $0x50] sm:$0xff]
      %v420 = vld [vmem:[%s408 + $0x58] sm:$0xff]
      %v421 = vld [vmem:[%s408 + $0x60] sm:$0xff]
      %v422 = vld [vmem:[%s408 + $0x68] sm:$0xff]
      %v423 = vld [vmem:[%s408 + $0x70] sm:$0xff]
      %v424 = vld [vmem:[%s408 + $0x78] sm:$0xff]
      %s425 = sld [smem:[#allocation7]]
      %v426 = vstv %s425
      %v427 = vmul.f32 %v426, %v409
      %v428 = vmul.f32 %v426, %v410
      %v429 = vmul.f32 %v426, %v411
      %v430 = vmul.f32 %v426, %v412
      %v431 = vmul.f32 %v426, %v413
      %v432 = vmul.f32 %v426, %v414
      %v433 = vmul.f32 %v426, %v415
      %v434 = vmul.f32 %v426, %v416
      %v435 = vmul.f32 %v426, %v417
      %v436 = vmul.f32 %v426, %v418
      %v437 = vmul.f32 %v426, %v419
      %v438 = vmul.f32 %v426, %v420
      %v439 = vmul.f32 %v426, %v421
      %v440 = vmul.f32 %v426, %v422
      %v441 = vmul.f32 %v426, %v423
      %v442 = vmul.f32 %v426, %v424
      %s443 = sld [smem:[#allocation7 + $0x1]]
      %v444 = vstv %s443
      %v445 = vmul.f32 %v444, %v409
      %v446 = vmul.f32 %v444, %v410
      %v447 = vmul.f32 %v444, %v411
      %v448 = vmul.f32 %v444, %v412
      %v449 = vmul.f32 %v444, %v413
      %v450 = vmul.f32 %v444, %v414
      %v451 = vmul.f32 %v444, %v415
      %v452 = vmul.f32 %v444, %v416
      %v453 = vmul.f32 %v444, %v417
      %v454 = vmul.f32 %v444, %v418
      %v455 = vmul.f32 %v444, %v419
      %v456 = vmul.f32 %v444, %v420
      %v457 = vmul.f32 %v444, %v421
      %v458 = vmul.f32 %v444, %v422
      %v459 = vmul.f32 %v444, %v423
      %v460 = vmul.f32 %v444, %v424
      %477 = vrot.lane.b32.xlu0 %v445, 127
      %v478 = vpop.permute.xlu0 %477
      %479 = vrot.lane.b32.xlu0 %v446, 127
      %v480 = vpop.permute.xlu0 %479
      %481 = vrot.lane.b32.xlu0 %v447, 127
      %v482 = vpop.permute.xlu0 %481
      %483 = vrot.lane.b32.xlu0 %v448, 127
      %v484 = vpop.permute.xlu0 %483
      %485 = vrot.lane.b32.xlu0 %v449, 127
      %v486 = vpop.permute.xlu0 %485
      %487 = vrot.lane.b32.xlu0 %v450, 127
      %v488 = vpop.permute.xlu0 %487
      %489 = vrot.lane.b32.xlu0 %v451, 127
      %v490 = vpop.permute.xlu0 %489
      %491 = vrot.lane.b32.xlu0 %v452, 127
      %v492 = vpop.permute.xlu0 %491
      %493 = vrot.lane.b32.xlu0 %v453, 127
      %v494 = vpop.permute.xlu0 %493
      %495 = vrot.lane.b32.xlu0 %v454, 127
      %v496 = vpop.permute.xlu0 %495
      %497 = vrot.lane.b32.xlu0 %v455, 127
      %v498 = vpop.permute.xlu0 %497
      %499 = vrot.lane.b32.xlu0 %v456, 127
      %v500 = vpop.permute.xlu0 %499
      %501 = vrot.lane.b32.xlu0 %v457, 127
      %v502 = vpop.permute.xlu0 %501
      %503 = vrot.lane.b32.xlu0 %v458, 127
      %v504 = vpop.permute.xlu0 %503
      %505 = vrot.lane.b32.xlu0 %v459, 127
      %v506 = vpop.permute.xlu0 %505
      %507 = vrot.lane.b32.xlu0 %v460, 127
      %v508 = vpop.permute.xlu0 %507
      %v525 = vadd.f32 %v427, %v478
      %v526 = vadd.f32 %v428, %v480
      %v527 = vadd.f32 %v429, %v482
      %v528 = vadd.f32 %v430, %v484
      %v529 = vadd.f32 %v431, %v486
      %v530 = vadd.f32 %v432, %v488
      %v531 = vadd.f32 %v433, %v490
      %v532 = vadd.f32 %v434, %v492
      %v533 = vadd.f32 %v435, %v494
      %v534 = vadd.f32 %v436, %v496
      %v535 = vadd.f32 %v437, %v498
      %v536 = vadd.f32 %v438, %v500
      %v537 = vadd.f32 %v439, %v502
      %v538 = vadd.f32 %v440, %v504
      %v539 = vadd.f32 %v441, %v506
      %v540 = vadd.f32 %v442, %v508
      %s541 = sld [smem:[#allocation7 + $0x2]]
      %v542 = vstv %s541
      %v543 = vmul.f32 %v542, %v409
      %v544 = vmul.f32 %v542, %v410
      %v545 = vmul.f32 %v542, %v411
      %v546 = vmul.f32 %v542, %v412
      %v547 = vmul.f32 %v542, %v413
      %v548 = vmul.f32 %v542, %v414
      %v549 = vmul.f32 %v542, %v415
      %v550 = vmul.f32 %v542, %v416
      %v551 = vmul.f32 %v542, %v417
      %v552 = vmul.f32 %v542, %v418
      %v553 = vmul.f32 %v542, %v419
      %v554 = vmul.f32 %v542, %v420
      %v555 = vmul.f32 %v542, %v421
      %v556 = vmul.f32 %v542, %v422
      %v557 = vmul.f32 %v542, %v423
      %v558 = vmul.f32 %v542, %v424
      %575 = vrot.lane.b32.xlu0 %v543, 126
      %v576 = vpop.permute.xlu0 %575
      %577 = vrot.lane.b32.xlu0 %v544, 126
      %v578 = vpop.permute.xlu0 %577
      %579 = vrot.lane.b32.xlu0 %v545, 126
      %v580 = vpop.permute.xlu0 %579
      %581 = vrot.lane.b32.xlu0 %v546, 126
      %v582 = vpop.permute.xlu0 %581
      %583 = vrot.lane.b32.xlu0 %v547, 126
      %v584 = vpop.permute.xlu0 %583
      %585 = vrot.lane.b32.xlu0 %v548, 126
      %v586 = vpop.permute.xlu0 %585
      %587 = vrot.lane.b32.xlu0 %v549, 126
      %v588 = vpop.permute.xlu0 %587
      %589 = vrot.lane.b32.xlu0 %v550, 126
      %v590 = vpop.permute.xlu0 %589
      %591 = vrot.lane.b32.xlu0 %v551, 126
      %v592 = vpop.permute.xlu0 %591
      %593 = vrot.lane.b32.xlu0 %v552, 126
      %v594 = vpop.permute.xlu0 %593
      %595 = vrot.lane.b32.xlu0 %v553, 126
      %v596 = vpop.permute.xlu0 %595
      %597 = vrot.lane.b32.xlu0 %v554, 126
      %v598 = vpop.permute.xlu0 %597
      %599 = vrot.lane.b32.xlu0 %v555, 126
      %v600 = vpop.permute.xlu0 %599
      %601 = vrot.lane.b32.xlu0 %v556, 126
      %v602 = vpop.permute.xlu0 %601
      %603 = vrot.lane.b32.xlu0 %v557, 126
      %v604 = vpop.permute.xlu0 %603
      %605 = vrot.lane.b32.xlu0 %v558, 126
      %v606 = vpop.permute.xlu0 %605
      %v623 = vadd.f32 %v525, %v576
      %v624 = vadd.f32 %v526, %v578
      %v625 = vadd.f32 %v527, %v580
      %v626 = vadd.f32 %v528, %v582
      %v627 = vadd.f32 %v529, %v584
      %v628 = vadd.f32 %v530, %v586
      %v629 = vadd.f32 %v531, %v588
      %v630 = vadd.f32 %v532, %v590
      %v631 = vadd.f32 %v533, %v592
      %v632 = vadd.f32 %v534, %v594
      %v633 = vadd.f32 %v535, %v596
      %v634 = vadd.f32 %v536, %v598
      %v635 = vadd.f32 %v537, %v600
      %v636 = vadd.f32 %v538, %v602
      %v637 = vadd.f32 %v539, %v604
      %v638 = vadd.f32 %v540, %v606
      %s639 = sld [smem:[#allocation7 + $0x9]]
      %v640 = vstv %s639
      %v641 = vadd.f32 %v623, %v640
      %v642 = vadd.f32 %v624, %v640
      %v643 = vadd.f32 %v625, %v640
      %v644 = vadd.f32 %v626, %v640
      %v645 = vadd.f32 %v627, %v640
      %v646 = vadd.f32 %v628, %v640
      %v647 = vadd.f32 %v629, %v640
      %v648 = vadd.f32 %v630, %v640
      %v649 = vadd.f32 %v631, %v640
      %v650 = vadd.f32 %v632, %v640
      %v651 = vadd.f32 %v633, %v640
      %v652 = vadd.f32 %v634, %v640
      %v653 = vadd.f32 %v635, %v640
      %v654 = vadd.f32 %v636, %v640
      %v655 = vadd.f32 %v637, %v640
      %v656 = vadd.f32 %v638, %v640
      %s657 = scalar_lea.vmem %s5, %s407
      %vm658 = vcmask 7168
      %659 = vst.msk [vmem:[%s657] sm:$0xff] %vm658, %v641
      %660 = vst.msk [vmem:[%s657 + $0x8] sm:$0xff] %vm658, %v642
      %661 = vst.msk [vmem:[%s657 + $0x10] sm:$0xff] %vm658, %v643
      %662 = vst.msk [vmem:[%s657 + $0x18] sm:$0xff] %vm658, %v644
      %663 = vst.msk [vmem:[%s657 + $0x20] sm:$0xff] %vm658, %v645
      %664 = vst.msk [vmem:[%s657 + $0x28] sm:$0xff] %vm658, %v646
      %665 = vst.msk [vmem:[%s657 + $0x30] sm:$0xff] %vm658, %v647
      %666 = vst.msk [vmem:[%s657 + $0x38] sm:$0xff] %vm658, %v648
      %667 = vst.msk [vmem:[%s657 + $0x40] sm:$0xff] %vm658, %v649
      %668 = vst.msk [vmem:[%s657 + $0x48] sm:$0xff] %vm658, %v650
      %669 = vst.msk [vmem:[%s657 + $0x50] sm:$0xff] %vm658, %v651
      %670 = vst.msk [vmem:[%s657 + $0x58] sm:$0xff] %vm658, %v652
      %671 = vst.msk [vmem:[%s657 + $0x60] sm:$0xff] %vm658, %v653
      %672 = vst.msk [vmem:[%s657 + $0x68] sm:$0xff] %vm658, %v654
      %673 = vst.msk [vmem:[%s657 + $0x70] sm:$0xff] %vm658, %v655
      %674 = vst.msk [vmem:[%s657 + $0x78] sm:$0xff] %vm658, %v656
      %v675 = vsel %vm658, %v641, 0.0
      %v676 = vsel %vm658, %v642, 0.0
      %v677 = vadd.f32 %v675, %v676
      %v678 = vsel %vm658, %v643, 0.0
      %v679 = vadd.f32 %v677, %v678
      %v680 = vsel %vm658, %v644, 0.0
      %v681 = vadd.f32 %v679, %v680
      %v682 = vsel %vm658, %v645, 0.0
      %v683 = vadd.f32 %v681, %v682
      %v684 = vsel %vm658, %v646, 0.0
      %v685 = vadd.f32 %v683, %v684
      %v686 = vsel %vm658, %v647, 0.0
      %v687 = vadd.f32 %v685, %v686
      %v688 = vsel %vm658, %v648, 0.0
      %v689 = vadd.f32 %v687, %v688
      %v690 = vsel %vm658, %v649, 0.0
      %v691 = vadd.f32 %v689, %v690
      %v692 = vsel %vm658, %v650, 0.0
      %v693 = vadd.f32 %v691, %v692
      %v694 = vsel %vm658, %v651, 0.0
      %v695 = vadd.f32 %v693, %v694
      %v696 = vsel %vm658, %v652, 0.0
      %v697 = vadd.f32 %v695, %v696
      %v698 = vsel %vm658, %v653, 0.0
      %v699 = vadd.f32 %v697, %v698
      %v700 = vsel %vm658, %v654, 0.0
      %v701 = vadd.f32 %v699, %v700
      %v702 = vsel %vm658, %v655, 0.0
      %v703 = vadd.f32 %v701, %v702
      %v704 = vsel %vm658, %v656, 0.0
      %v705 = vadd.f32 %v703, %v704
      %706 = vadd.xlane.f32.xlu0 %v705
      %v707 = vpop.xlane.xlu0 %706
      %v708 = vrot.slane %v707, 4
      %v709 = vadd.f32 %v707, %v708
      %v710 = vrot.slane %v709, 2
      %v711 = vadd.f32 %v709, %v710
      %v712 = vrot.slane %v711, 1
      %v713 = vadd.f32 %v711, %v712
      %s714 = vtos %v713
      %s715 = sld [smem:[#allocation7 + $0x3]]
      %v716 = vstv %s715
      %v717 = vmul.f32 %v716, %v409
      %v718 = vmul.f32 %v716, %v410
      %v719 = vmul.f32 %v716, %v411
      %v720 = vmul.f32 %v716, %v412
      %v721 = vmul.f32 %v716, %v413
      %v722 = vmul.f32 %v716, %v414
      %v723 = vmul.f32 %v716, %v415
      %v724 = vmul.f32 %v716, %v416
      %v725 = vmul.f32 %v716, %v417
      %v726 = vmul.f32 %v716, %v418
      %v727 = vmul.f32 %v716, %v419
      %v728 = vmul.f32 %v716, %v420
      %v729 = vmul.f32 %v716, %v421
      %v730 = vmul.f32 %v716, %v422
      %v731 = vmul.f32 %v716, %v423
      %v732 = vmul.f32 %v716, %v424
      %s733 = sld [smem:[#allocation7 + $0x4]]
      %v734 = vstv %s733
      %v735 = vmul.f32 %v734, %v409
      %v736 = vmul.f32 %v734, %v410
      %v737 = vmul.f32 %v734, %v411
      %v738 = vmul.f32 %v734, %v412
      %v739 = vmul.f32 %v734, %v413
      %v740 = vmul.f32 %v734, %v414
      %v741 = vmul.f32 %v734, %v415
      %v742 = vmul.f32 %v734, %v416
      %v743 = vmul.f32 %v734, %v417
      %v744 = vmul.f32 %v734, %v418
      %v745 = vmul.f32 %v734, %v419
      %v746 = vmul.f32 %v734, %v420
      %v747 = vmul.f32 %v734, %v421
      %v748 = vmul.f32 %v734, %v422
      %v749 = vmul.f32 %v734, %v423
      %v750 = vmul.f32 %v734, %v424
      %767 = vrot.lane.b32.xlu0 %v735, 127
      %v768 = vpop.permute.xlu0 %767
      %769 = vrot.lane.b32.xlu0 %v736, 127
      %v770 = vpop.permute.xlu0 %769
      %771 = vrot.lane.b32.xlu0 %v737, 127
      %v772 = vpop.permute.xlu0 %771
      %773 = vrot.lane.b32.xlu0 %v738, 127
      %v774 = vpop.permute.xlu0 %773
      %775 = vrot.lane.b32.xlu0 %v739, 127
      %v776 = vpop.permute.xlu0 %775
      %777 = vrot.lane.b32.xlu0 %v740, 127
      %v778 = vpop.permute.xlu0 %777
      %779 = vrot.lane.b32.xlu0 %v741, 127
      %v780 = vpop.permute.xlu0 %779
      %781 = vrot.lane.b32.xlu0 %v742, 127
      %v782 = vpop.permute.xlu0 %781
      %783 = vrot.lane.b32.xlu0 %v743, 127
      %v784 = vpop.permute.xlu0 %783
      %785 = vrot.lane.b32.xlu0 %v744, 127
      %v786 = vpop.permute.xlu0 %785
      %787 = vrot.lane.b32.xlu0 %v745, 127
      %v788 = vpop.permute.xlu0 %787
      %789 = vrot.lane.b32.xlu0 %v746, 127
      %v790 = vpop.permute.xlu0 %789
      %791 = vrot.lane.b32.xlu0 %v747, 127
      %v792 = vpop.permute.xlu0 %791
      %793 = vrot.lane.b32.xlu0 %v748, 127
      %v794 = vpop.permute.xlu0 %793
      %795 = vrot.lane.b32.xlu0 %v749, 127
      %v796 = vpop.permute.xlu0 %795
      %797 = vrot.lane.b32.xlu0 %v750, 127
      %v798 = vpop.permute.xlu0 %797
      %v815 = vadd.f32 %v717, %v768
      %v816 = vadd.f32 %v718, %v770
      %v817 = vadd.f32 %v719, %v772
      %v818 = vadd.f32 %v720, %v774
      %v819 = vadd.f32 %v721, %v776
      %v820 = vadd.f32 %v722, %v778
      %v821 = vadd.f32 %v723, %v780
      %v822 = vadd.f32 %v724, %v782
      %v823 = vadd.f32 %v725, %v784
      %v824 = vadd.f32 %v726, %v786
      %v825 = vadd.f32 %v727, %v788
      %v826 = vadd.f32 %v728, %v790
      %v827 = vadd.f32 %v729, %v792
      %v828 = vadd.f32 %v730, %v794
      %v829 = vadd.f32 %v731, %v796
      %v830 = vadd.f32 %v732, %v798
      %s831 = sld [smem:[#allocation7 + $0x5]]
      %v832 = vstv %s831
      %v833 = vmul.f32 %v832, %v409
      %v834 = vmul.f32 %v832, %v410
      %v835 = vmul.f32 %v832, %v411
      %v836 = vmul.f32 %v832, %v412
      %v837 = vmul.f32 %v832, %v413
      %v838 = vmul.f32 %v832, %v414
      %v839 = vmul.f32 %v832, %v415
      %v840 = vmul.f32 %v832, %v416
      %v841 = vmul.f32 %v832, %v417
      %v842 = vmul.f32 %v832, %v418
      %v843 = vmul.f32 %v832, %v419
      %v844 = vmul.f32 %v832, %v420
      %v845 = vmul.f32 %v832, %v421
      %v846 = vmul.f32 %v832, %v422
      %v847 = vmul.f32 %v832, %v423
      %v848 = vmul.f32 %v832, %v424
      %865 = vrot.lane.b32.xlu0 %v833, 126
      %v866 = vpop.permute.xlu0 %865
      %867 = vrot.lane.b32.xlu0 %v834, 126
      %v868 = vpop.permute.xlu0 %867
      %869 = vrot.lane.b32.xlu0 %v835, 126
      %v870 = vpop.permute.xlu0 %869
      %871 = vrot.lane.b32.xlu0 %v836, 126
      %v872 = vpop.permute.xlu0 %871
      %873 = vrot.lane.b32.xlu0 %v837, 126
      %v874 = vpop.permute.xlu0 %873
      %875 = vrot.lane.b32.xlu0 %v838, 126
      %v876 = vpop.permute.xlu0 %875
      %877 = vrot.lane.b32.xlu0 %v839, 126
      %v878 = vpop.permute.xlu0 %877
      %879 = vrot.lane.b32.xlu0 %v840, 126
      %v880 = vpop.permute.xlu0 %879
      %881 = vrot.lane.b32.xlu0 %v841, 126
      %v882 = vpop.permute.xlu0 %881
      %883 = vrot.lane.b32.xlu0 %v842, 126
      %v884 = vpop.permute.xlu0 %883
      %885 = vrot.lane.b32.xlu0 %v843, 126
      %v886 = vpop.permute.xlu0 %885
      %887 = vrot.lane.b32.xlu0 %v844, 126
      %v888 = vpop.permute.xlu0 %887
      %889 = vrot.lane.b32.xlu0 %v845, 126
      %v890 = vpop.permute.xlu0 %889
      %891 = vrot.lane.b32.xlu0 %v846, 126
      %v892 = vpop.permute.xlu0 %891
      %893 = vrot.lane.b32.xlu0 %v847, 126
      %v894 = vpop.permute.xlu0 %893
      %895 = vrot.lane.b32.xlu0 %v848, 126
      %v896 = vpop.permute.xlu0 %895
      %v913 = vadd.f32 %v815, %v866
      %v914 = vadd.f32 %v816, %v868
      %v915 = vadd.f32 %v817, %v870
      %v916 = vadd.f32 %v818, %v872
      %v917 = vadd.f32 %v819, %v874
      %v918 = vadd.f32 %v820, %v876
      %v919 = vadd.f32 %v821, %v878
      %v920 = vadd.f32 %v822, %v880
      %v921 = vadd.f32 %v823, %v882
      %v922 = vadd.f32 %v824, %v884
      %v923 = vadd.f32 %v825, %v886
      %v924 = vadd.f32 %v826, %v888
      %v925 = vadd.f32 %v827, %v890
      %v926 = vadd.f32 %v828, %v892
      %v927 = vadd.f32 %v829, %v894
      %v928 = vadd.f32 %v830, %v896
      %s929 = sld [smem:[#allocation7 + $0xa]]
      %v930 = vstv %s929
      %v931 = vadd.f32 %v913, %v930
      %v932 = vadd.f32 %v914, %v930
      %v933 = vadd.f32 %v915, %v930
      %v934 = vadd.f32 %v916, %v930
      %v935 = vadd.f32 %v917, %v930
      %v936 = vadd.f32 %v918, %v930
      %v937 = vadd.f32 %v919, %v930
      %v938 = vadd.f32 %v920, %v930
      %v939 = vadd.f32 %v921, %v930
      %v940 = vadd.f32 %v922, %v930
      %v941 = vadd.f32 %v923, %v930
      %v942 = vadd.f32 %v924, %v930
      %v943 = vadd.f32 %v925, %v930
      %v944 = vadd.f32 %v926, %v930
      %v945 = vadd.f32 %v927, %v930
      %v946 = vadd.f32 %v928, %v930
      %963 = vrot.lane.b32.xlu0 %v931, 1
      %v964 = vpop.permute.xlu0 %963
      %965 = vrot.lane.b32.xlu0 %v932, 1
      %v966 = vpop.permute.xlu0 %965
      %967 = vrot.lane.b32.xlu0 %v933, 1
      %v968 = vpop.permute.xlu0 %967
      %969 = vrot.lane.b32.xlu0 %v934, 1
      %v970 = vpop.permute.xlu0 %969
      %971 = vrot.lane.b32.xlu0 %v935, 1
      %v972 = vpop.permute.xlu0 %971
      %973 = vrot.lane.b32.xlu0 %v936, 1
      %v974 = vpop.permute.xlu0 %973
      %975 = vrot.lane.b32.xlu0 %v937, 1
      %v976 = vpop.permute.xlu0 %975
      %977 = vrot.lane.b32.xlu0 %v938, 1
      %v978 = vpop.permute.xlu0 %977
      %979 = vrot.lane.b32.xlu0 %v939, 1
      %v980 = vpop.permute.xlu0 %979
      %981 = vrot.lane.b32.xlu0 %v940, 1
      %v982 = vpop.permute.xlu0 %981
      %983 = vrot.lane.b32.xlu0 %v941, 1
      %v984 = vpop.permute.xlu0 %983
      %985 = vrot.lane.b32.xlu0 %v942, 1
      %v986 = vpop.permute.xlu0 %985
      %987 = vrot.lane.b32.xlu0 %v943, 1
      %v988 = vpop.permute.xlu0 %987
      %989 = vrot.lane.b32.xlu0 %v944, 1
      %v990 = vpop.permute.xlu0 %989
      %991 = vrot.lane.b32.xlu0 %v945, 1
      %v992 = vpop.permute.xlu0 %991
      %993 = vrot.lane.b32.xlu0 %v946, 1
      %v994 = vpop.permute.xlu0 %993
      %vm1011 = vcmask 15368
      %1012 = vst.msk [vmem:[%s657] sm:$0xff] %vm1011, %v964
      %1013 = vst.msk [vmem:[%s657 + $0x8] sm:$0xff] %vm1011, %v966
      %1014 = vst.msk [vmem:[%s657 + $0x10] sm:$0xff] %vm1011, %v968
      %1015 = vst.msk [vmem:[%s657 + $0x18] sm:$0xff] %vm1011, %v970
      %1016 = vst.msk [vmem:[%s657 + $0x20] sm:$0xff] %vm1011, %v972
      %1017 = vst.msk [vmem:[%s657 + $0x28] sm:$0xff] %vm1011, %v974
      %1018 = vst.msk [vmem:[%s657 + $0x30] sm:$0xff] %vm1011, %v976
      %1019 = vst.msk [vmem:[%s657 + $0x38] sm:$0xff] %vm1011, %v978
      %1020 = vst.msk [vmem:[%s657 + $0x40] sm:$0xff] %vm1011, %v980
      %1021 = vst.msk [vmem:[%s657 + $0x48] sm:$0xff] %vm1011, %v982
      %1022 = vst.msk [vmem:[%s657 + $0x50] sm:$0xff] %vm1011, %v984
      %1023 = vst.msk [vmem:[%s657 + $0x58] sm:$0xff] %vm1011, %v986
      %1024 = vst.msk [vmem:[%s657 + $0x60] sm:$0xff] %vm1011, %v988
      %1025 = vst.msk [vmem:[%s657 + $0x68] sm:$0xff] %vm1011, %v990
      %1026 = vst.msk [vmem:[%s657 + $0x70] sm:$0xff] %vm1011, %v992
      %1027 = vst.msk [vmem:[%s657 + $0x78] sm:$0xff] %vm1011, %v994
      %v1028 = vsel %vm658, %v931, 0.0
      %v1029 = vsel %vm658, %v932, 0.0
      %v1030 = vadd.f32 %v1028, %v1029
      %v1031 = vsel %vm658, %v933, 0.0
      %v1032 = vadd.f32 %v1030, %v1031
      %v1033 = vsel %vm658, %v934, 0.0
      %v1034 = vadd.f32 %v1032, %v1033
      %v1035 = vsel %vm658, %v935, 0.0
      %v1036 = vadd.f32 %v1034, %v1035
      %v1037 = vsel %vm658, %v936, 0.0
      %v1038 = vadd.f32 %v1036, %v1037
      %v1039 = vsel %vm658, %v937, 0.0
      %v1040 = vadd.f32 %v1038, %v1039
      %v1041 = vsel %vm658, %v938, 0.0
      %v1042 = vadd.f32 %v1040, %v1041
      %v1043 = vsel %vm658, %v939, 0.0
      %v1044 = vadd.f32 %v1042, %v1043
      %v1045 = vsel %vm658, %v940, 0.0
      %v1046 = vadd.f32 %v1044, %v1045
      %v1047 = vsel %vm658, %v941, 0.0
      %v1048 = vadd.f32 %v1046, %v1047
      %v1049 = vsel %vm658, %v942, 0.0
      %v1050 = vadd.f32 %v1048, %v1049
      %v1051 = vsel %vm658, %v943, 0.0
      %v1052 = vadd.f32 %v1050, %v1051
      %v1053 = vsel %vm658, %v944, 0.0
      %v1054 = vadd.f32 %v1052, %v1053
      %v1055 = vsel %vm658, %v945, 0.0
      %v1056 = vadd.f32 %v1054, %v1055
      %v1057 = vsel %vm658, %v946, 0.0
      %v1058 = vadd.f32 %v1056, %v1057
      %1059 = vadd.xlane.f32.xlu0 %v1058
      %v1060 = vpop.xlane.xlu0 %1059
      %v1061 = vrot.slane %v1060, 4
      %v1062 = vadd.f32 %v1060, %v1061
      %v1063 = vrot.slane %v1062, 2
      %v1064 = vadd.f32 %v1062, %v1063
      %v1065 = vrot.slane %v1064, 1
      %v1066 = vadd.f32 %v1064, %v1065
      %s1067 = vtos %v1066
      %s1068 = sld [smem:[#allocation7 + $0x6]]
      %v1069 = vstv %s1068
      %v1070 = vmul.f32 %v1069, %v409
      %v1071 = vmul.f32 %v1069, %v410
      %v1072 = vmul.f32 %v1069, %v411
      %v1073 = vmul.f32 %v1069, %v412
      %v1074 = vmul.f32 %v1069, %v413
      %v1075 = vmul.f32 %v1069, %v414
      %v1076 = vmul.f32 %v1069, %v415
      %v1077 = vmul.f32 %v1069, %v416
      %v1078 = vmul.f32 %v1069, %v417
      %v1079 = vmul.f32 %v1069, %v418
      %v1080 = vmul.f32 %v1069, %v419
      %v1081 = vmul.f32 %v1069, %v420
      %v1082 = vmul.f32 %v1069, %v421
      %v1083 = vmul.f32 %v1069, %v422
      %v1084 = vmul.f32 %v1069, %v423
      %v1085 = vmul.f32 %v1069, %v424
      %s1086 = sld [smem:[#allocation7 + $0x7]]
      %v1087 = vstv %s1086
      %v1088 = vmul.f32 %v1087, %v409
      %v1089 = vmul.f32 %v1087, %v410
      %v1090 = vmul.f32 %v1087, %v411
      %v1091 = vmul.f32 %v1087, %v412
      %v1092 = vmul.f32 %v1087, %v413
      %v1093 = vmul.f32 %v1087, %v414
      %v1094 = vmul.f32 %v1087, %v415
      %v1095 = vmul.f32 %v1087, %v416
      %v1096 = vmul.f32 %v1087, %v417
      %v1097 = vmul.f32 %v1087, %v418
      %v1098 = vmul.f32 %v1087, %v419
      %v1099 = vmul.f32 %v1087, %v420
      %v1100 = vmul.f32 %v1087, %v421
      %v1101 = vmul.f32 %v1087, %v422
      %v1102 = vmul.f32 %v1087, %v423
      %v1103 = vmul.f32 %v1087, %v424
      %1120 = vrot.lane.b32.xlu0 %v1088, 127
      %v1121 = vpop.permute.xlu0 %1120
      %1122 = vrot.lane.b32.xlu0 %v1089, 127
      %v1123 = vpop.permute.xlu0 %1122
      %1124 = vrot.lane.b32.xlu0 %v1090, 127
      %v1125 = vpop.permute.xlu0 %1124
      %1126 = vrot.lane.b32.xlu0 %v1091, 127
      %v1127 = vpop.permute.xlu0 %1126
      %1128 = vrot.lane.b32.xlu0 %v1092, 127
      %v1129 = vpop.permute.xlu0 %1128
      %1130 = vrot.lane.b32.xlu0 %v1093, 127
      %v1131 = vpop.permute.xlu0 %1130
      %1132 = vrot.lane.b32.xlu0 %v1094, 127
      %v1133 = vpop.permute.xlu0 %1132
      %1134 = vrot.lane.b32.xlu0 %v1095, 127
      %v1135 = vpop.permute.xlu0 %1134
      %1136 = vrot.lane.b32.xlu0 %v1096, 127
      %v1137 = vpop.permute.xlu0 %1136
      %1138 = vrot.lane.b32.xlu0 %v1097, 127
      %v1139 = vpop.permute.xlu0 %1138
      %1140 = vrot.lane.b32.xlu0 %v1098, 127
      %v1141 = vpop.permute.xlu0 %1140
      %1142 = vrot.lane.b32.xlu0 %v1099, 127
      %v1143 = vpop.permute.xlu0 %1142
      %1144 = vrot.lane.b32.xlu0 %v1100, 127
      %v1145 = vpop.permute.xlu0 %1144
      %1146 = vrot.lane.b32.xlu0 %v1101, 127
      %v1147 = vpop.permute.xlu0 %1146
      %1148 = vrot.lane.b32.xlu0 %v1102, 127
      %v1149 = vpop.permute.xlu0 %1148
      %1150 = vrot.lane.b32.xlu0 %v1103, 127
      %v1151 = vpop.permute.xlu0 %1150
      %v1168 = vadd.f32 %v1070, %v1121
      %v1169 = vadd.f32 %v1071, %v1123
      %v1170 = vadd.f32 %v1072, %v1125
      %v1171 = vadd.f32 %v1073, %v1127
      %v1172 = vadd.f32 %v1074, %v1129
      %v1173 = vadd.f32 %v1075, %v1131
      %v1174 = vadd.f32 %v1076, %v1133
      %v1175 = vadd.f32 %v1077, %v1135
      %v1176 = vadd.f32 %v1078, %v1137
      %v1177 = vadd.f32 %v1079, %v1139
      %v1178 = vadd.f32 %v1080, %v1141
      %v1179 = vadd.f32 %v1081, %v1143
      %v1180 = vadd.f32 %v1082, %v1145
      %v1181 = vadd.f32 %v1083, %v1147
      %v1182 = vadd.f32 %v1084, %v1149
      %v1183 = vadd.f32 %v1085, %v1151
      %s1184 = sld [smem:[#allocation7 + $0x8]]
      %v1185 = vstv %s1184
      %v1186 = vmul.f32 %v1185, %v409
      %v1187 = vmul.f32 %v1185, %v410
      %v1188 = vmul.f32 %v1185, %v411
      %v1189 = vmul.f32 %v1185, %v412
      %v1190 = vmul.f32 %v1185, %v413
      %v1191 = vmul.f32 %v1185, %v414
      %v1192 = vmul.f32 %v1185, %v415
      %v1193 = vmul.f32 %v1185, %v416
      %v1194 = vmul.f32 %v1185, %v417
      %v1195 = vmul.f32 %v1185, %v418
      %v1196 = vmul.f32 %v1185, %v419
      %v1197 = vmul.f32 %v1185, %v420
      %v1198 = vmul.f32 %v1185, %v421
      %v1199 = vmul.f32 %v1185, %v422
      %v1200 = vmul.f32 %v1185, %v423
      %v1201 = vmul.f32 %v1185, %v424
      %1218 = vrot.lane.b32.xlu0 %v1186, 126
      %v1219 = vpop.permute.xlu0 %1218
      %1220 = vrot.lane.b32.xlu0 %v1187, 126
      %v1221 = vpop.permute.xlu0 %1220
      %1222 = vrot.lane.b32.xlu0 %v1188, 126
      %v1223 = vpop.permute.xlu0 %1222
      %1224 = vrot.lane.b32.xlu0 %v1189, 126
      %v1225 = vpop.permute.xlu0 %1224
      %1226 = vrot.lane.b32.xlu0 %v1190, 126
      %v1227 = vpop.permute.xlu0 %1226
      %1228 = vrot.lane.b32.xlu0 %v1191, 126
      %v1229 = vpop.permute.xlu0 %1228
      %1230 = vrot.lane.b32.xlu0 %v1192, 126
      %v1231 = vpop.permute.xlu0 %1230
      %1232 = vrot.lane.b32.xlu0 %v1193, 126
      %v1233 = vpop.permute.xlu0 %1232
      %1234 = vrot.lane.b32.xlu0 %v1194, 126
      %v1235 = vpop.permute.xlu0 %1234
      %1236 = vrot.lane.b32.xlu0 %v1195, 126
      %v1237 = vpop.permute.xlu0 %1236
      %1238 = vrot.lane.b32.xlu0 %v1196, 126
      %v1239 = vpop.permute.xlu0 %1238
      %1240 = vrot.lane.b32.xlu0 %v1197, 126
      %v1241 = vpop.permute.xlu0 %1240
      %1242 = vrot.lane.b32.xlu0 %v1198, 126
      %v1243 = vpop.permute.xlu0 %1242
      %1244 = vrot.lane.b32.xlu0 %v1199, 126
      %v1245 = vpop.permute.xlu0 %1244
      %1246 = vrot.lane.b32.xlu0 %v1200, 126
      %v1247 = vpop.permute.xlu0 %1246
      %1248 = vrot.lane.b32.xlu0 %v1201, 126
      %v1249 = vpop.permute.xlu0 %1248
      %v1266 = vadd.f32 %v1168, %v1219
      %v1267 = vadd.f32 %v1169, %v1221
      %v1268 = vadd.f32 %v1170, %v1223
      %v1269 = vadd.f32 %v1171, %v1225
      %v1270 = vadd.f32 %v1172, %v1227
      %v1271 = vadd.f32 %v1173, %v1229
      %v1272 = vadd.f32 %v1174, %v1231
      %v1273 = vadd.f32 %v1175, %v1233
      %v1274 = vadd.f32 %v1176, %v1235
      %v1275 = vadd.f32 %v1177, %v1237
      %v1276 = vadd.f32 %v1178, %v1239
      %v1277 = vadd.f32 %v1179, %v1241
      %v1278 = vadd.f32 %v1180, %v1243
      %v1279 = vadd.f32 %v1181, %v1245
      %v1280 = vadd.f32 %v1182, %v1247
      %v1281 = vadd.f32 %v1183, %v1249
      %s1282 = sld [smem:[#allocation7 + $0xb]]
      %v1283 = vstv %s1282
      %v1284 = vadd.f32 %v1266, %v1283
      %v1285 = vadd.f32 %v1267, %v1283
      %v1286 = vadd.f32 %v1268, %v1283
      %v1287 = vadd.f32 %v1269, %v1283
      %v1288 = vadd.f32 %v1270, %v1283
      %v1289 = vadd.f32 %v1271, %v1283
      %v1290 = vadd.f32 %v1272, %v1283
      %v1291 = vadd.f32 %v1273, %v1283
      %v1292 = vadd.f32 %v1274, %v1283
      %v1293 = vadd.f32 %v1275, %v1283
      %v1294 = vadd.f32 %v1276, %v1283
      %v1295 = vadd.f32 %v1277, %v1283
      %v1296 = vadd.f32 %v1278, %v1283
      %v1297 = vadd.f32 %v1279, %v1283
      %v1298 = vadd.f32 %v1280, %v1283
      %v1299 = vadd.f32 %v1281, %v1283
      %1316 = vrot.lane.b32.xlu0 %v1284, 2
      %v1317 = vpop.permute.xlu0 %1316
      %1318 = vrot.lane.b32.xlu0 %v1285, 2
      %v1319 = vpop.permute.xlu0 %1318
      %1320 = vrot.lane.b32.xlu0 %v1286, 2
      %v1321 = vpop.permute.xlu0 %1320
      %1322 = vrot.lane.b32.xlu0 %v1287, 2
      %v1323 = vpop.permute.xlu0 %1322
      %1324 = vrot.lane.b32.xlu0 %v1288, 2
      %v1325 = vpop.permute.xlu0 %1324
      %1326 = vrot.lane.b32.xlu0 %v1289, 2
      %v1327 = vpop.permute.xlu0 %1326
      %1328 = vrot.lane.b32.xlu0 %v1290, 2
      %v1329 = vpop.permute.xlu0 %1328
      %1330 = vrot.lane.b32.xlu0 %v1291, 2
      %v1331 = vpop.permute.xlu0 %1330
      %1332 = vrot.lane.b32.xlu0 %v1292, 2
      %v1333 = vpop.permute.xlu0 %1332
      %1334 = vrot.lane.b32.xlu0 %v1293, 2
      %v1335 = vpop.permute.xlu0 %1334
      %1336 = vrot.lane.b32.xlu0 %v1294, 2
      %v1337 = vpop.permute.xlu0 %1336
      %1338 = vrot.lane.b32.xlu0 %v1295, 2
      %v1339 = vpop.permute.xlu0 %1338
      %1340 = vrot.lane.b32.xlu0 %v1296, 2
      %v1341 = vpop.permute.xlu0 %1340
      %1342 = vrot.lane.b32.xlu0 %v1297, 2
      %v1343 = vpop.permute.xlu0 %1342
      %1344 = vrot.lane.b32.xlu0 %v1298, 2
      %v1345 = vpop.permute.xlu0 %1344
      %1346 = vrot.lane.b32.xlu0 %v1299, 2
      %v1347 = vpop.permute.xlu0 %1346
      %vm1364 = vcmask 23568
      %1365 = vst.msk [vmem:[%s657] sm:$0xff] %vm1364, %v1317
      %1366 = vst.msk [vmem:[%s657 + $0x8] sm:$0xff] %vm1364, %v1319
      %1367 = vst.msk [vmem:[%s657 + $0x10] sm:$0xff] %vm1364, %v1321
      %1368 = vst.msk [vmem:[%s657 + $0x18] sm:$0xff] %vm1364, %v1323
      %1369 = vst.msk [vmem:[%s657 + $0x20] sm:$0xff] %vm1364, %v1325
      %1370 = vst.msk [vmem:[%s657 + $0x28] sm:$0xff] %vm1364, %v1327
      %1371 = vst.msk [vmem:[%s657 + $0x30] sm:$0xff] %vm1364, %v1329
      %1372 = vst.msk [vmem:[%s657 + $0x38] sm:$0xff] %vm1364, %v1331
      %1373 = vst.msk [vmem:[%s657 + $0x40] sm:$0xff] %vm1364, %v1333
      %1374 = vst.msk [vmem:[%s657 + $0x48] sm:$0xff] %vm1364, %v1335
      %1375 = vst.msk [vmem:[%s657 + $0x50] sm:$0xff] %vm1364, %v1337
      %1376 = vst.msk [vmem:[%s657 + $0x58] sm:$0xff] %vm1364, %v1339
      %1377 = vst.msk [vmem:[%s657 + $0x60] sm:$0xff] %vm1364, %v1341
      %1378 = vst.msk [vmem:[%s657 + $0x68] sm:$0xff] %vm1364, %v1343
      %1379 = vst.msk [vmem:[%s657 + $0x70] sm:$0xff] %vm1364, %v1345
      %1380 = vst.msk [vmem:[%s657 + $0x78] sm:$0xff] %vm1364, %v1347
      %v1381 = vsel %vm658, %v1284, 0.0
      %v1382 = vsel %vm658, %v1285, 0.0
      %v1383 = vadd.f32 %v1381, %v1382
      %v1384 = vsel %vm658, %v1286, 0.0
      %v1385 = vadd.f32 %v1383, %v1384
      %v1386 = vsel %vm658, %v1287, 0.0
      %v1387 = vadd.f32 %v1385, %v1386
      %v1388 = vsel %vm658, %v1288, 0.0
      %v1389 = vadd.f32 %v1387, %v1388
      %v1390 = vsel %vm658, %v1289, 0.0
      %v1391 = vadd.f32 %v1389, %v1390
      %v1392 = vsel %vm658, %v1290, 0.0
      %v1393 = vadd.f32 %v1391, %v1392
      %v1394 = vsel %vm658, %v1291, 0.0
      %v1395 = vadd.f32 %v1393, %v1394
      %v1396 = vsel %vm658, %v1292, 0.0
      %v1397 = vadd.f32 %v1395, %v1396
      %v1398 = vsel %vm658, %v1293, 0.0
      %v1399 = vadd.f32 %v1397, %v1398
      %v1400 = vsel %vm658, %v1294, 0.0
      %v1401 = vadd.f32 %v1399, %v1400
      %v1402 = vsel %vm658, %v1295, 0.0
      %v1403 = vadd.f32 %v1401, %v1402
      %v1404 = vsel %vm658, %v1296, 0.0
      %v1405 = vadd.f32 %v1403, %v1404
      %v1406 = vsel %vm658, %v1297, 0.0
      %v1407 = vadd.f32 %v1405, %v1406
      %v1408 = vsel %vm658, %v1298, 0.0
      %v1409 = vadd.f32 %v1407, %v1408
      %v1410 = vsel %vm658, %v1299, 0.0
      %v1411 = vadd.f32 %v1409, %v1410
      %1412 = vadd.xlane.f32.xlu0 %v1411
      %v1413 = vpop.xlane.xlu0 %1412
      %v1414 = vrot.slane %v1413, 4
      %v1415 = vadd.f32 %v1413, %v1414
      %v1416 = vrot.slane %v1415, 2
      %v1417 = vadd.f32 %v1415, %v1416
      %v1418 = vrot.slane %v1417, 1
      %v1419 = vadd.f32 %v1417, %v1418
      %s1420 = vtos %v1419
      %v1421 = vld [vmem:[%s657] sm:$0xff]
      %v1422 = vld [vmem:[%s657 + $0x8] sm:$0xff]
      %v1423 = vld [vmem:[%s657 + $0x10] sm:$0xff]
      %v1424 = vld [vmem:[%s657 + $0x18] sm:$0xff]
      %v1425 = vld [vmem:[%s657 + $0x20] sm:$0xff]
      %v1426 = vld [vmem:[%s657 + $0x28] sm:$0xff]
      %v1427 = vld [vmem:[%s657 + $0x30] sm:$0xff]
      %v1428 = vld [vmem:[%s657 + $0x38] sm:$0xff]
      %v1429 = vld [vmem:[%s657 + $0x40] sm:$0xff]
      %v1430 = vld [vmem:[%s657 + $0x48] sm:$0xff]
      %v1431 = vld [vmem:[%s657 + $0x50] sm:$0xff]
      %v1432 = vld [vmem:[%s657 + $0x58] sm:$0xff]
      %v1433 = vld [vmem:[%s657 + $0x60] sm:$0xff]
      %v1434 = vld [vmem:[%s657 + $0x68] sm:$0xff]
      %v1435 = vld [vmem:[%s657 + $0x70] sm:$0xff]
      %v1436 = vld [vmem:[%s657 + $0x78] sm:$0xff]
      %v1437 = vld [vmem:[#allocation8] sm:$0x1]
      %1439 = vset.pattern.permute.xlu0 0
      %1440 = vperm.xlu0 %1439, %v1421
      %v1441 = vpop.permute.xlu0 %1440
      %1444 = vset.pattern.permute.xlu0 0
      %1445 = vperm.xlu0 %1444, %v1422
      %v1446 = vpop.permute.xlu0 %1445
      %1449 = vset.pattern.permute.xlu0 0
      %1450 = vperm.xlu0 %1449, %v1423
      %v1451 = vpop.permute.xlu0 %1450
      %1454 = vset.pattern.permute.xlu0 0
      %1455 = vperm.xlu0 %1454, %v1424
      %v1456 = vpop.permute.xlu0 %1455
      %1459 = vset.pattern.permute.xlu0 0
      %1460 = vperm.xlu0 %1459, %v1425
      %v1461 = vpop.permute.xlu0 %1460
      %1464 = vset.pattern.permute.xlu0 0
      %1465 = vperm.xlu0 %1464, %v1426
      %v1466 = vpop.permute.xlu0 %1465
      %1469 = vset.pattern.permute.xlu0 0
      %1470 = vperm.xlu0 %1469, %v1427
      %v1471 = vpop.permute.xlu0 %1470
      %1474 = vset.pattern.permute.xlu0 0
      %1475 = vperm.xlu0 %1474, %v1428
      %v1476 = vpop.permute.xlu0 %1475
      %1479 = vset.pattern.permute.xlu0 0
      %1480 = vperm.xlu0 %1479, %v1429
      %v1481 = vpop.permute.xlu0 %1480
      %1484 = vset.pattern.permute.xlu0 0
      %1485 = vperm.xlu0 %1484, %v1430
      %v1486 = vpop.permute.xlu0 %1485
      %1489 = vset.pattern.permute.xlu0 0
      %1490 = vperm.xlu0 %1489, %v1431
      %v1491 = vpop.permute.xlu0 %1490
      %1494 = vset.pattern.permute.xlu0 0
      %1495 = vperm.xlu0 %1494, %v1432
      %v1496 = vpop.permute.xlu0 %1495
      %1499 = vset.pattern.permute.xlu0 0
      %1500 = vperm.xlu0 %1499, %v1433
      %v1501 = vpop.permute.xlu0 %1500
      %1504 = vset.pattern.permute.xlu0 0
      %1505 = vperm.xlu0 %1504, %v1434
      %v1506 = vpop.permute.xlu0 %1505
      %1509 = vset.pattern.permute.xlu0 0
      %1510 = vperm.xlu0 %1509, %v1435
      %v1511 = vpop.permute.xlu0 %1510
      %1514 = vset.pattern.permute.xlu0 0
      %1515 = vperm.xlu0 %1514, %v1436
      %v1516 = vpop.permute.xlu0 %1515
      %v1518 = vperm.slane %v1437, 0
      %v1519 = vsub.f32 %v1441, %v1518
      %v1520 = vsub.f32 %v1446, %v1518
      %v1521 = vsub.f32 %v1451, %v1518
      %v1522 = vsub.f32 %v1456, %v1518
      %v1523 = vsub.f32 %v1461, %v1518
      %v1524 = vsub.f32 %v1466, %v1518
      %v1525 = vsub.f32 %v1471, %v1518
      %v1526 = vsub.f32 %v1476, %v1518
      %v1527 = vsub.f32 %v1481, %v1518
      %v1528 = vsub.f32 %v1486, %v1518
      %v1529 = vsub.f32 %v1491, %v1518
      %v1530 = vsub.f32 %v1496, %v1518
      %v1531 = vsub.f32 %v1501, %v1518
      %v1532 = vsub.f32 %v1506, %v1518
      %v1533 = vsub.f32 %v1511, %v1518
      %v1534 = vsub.f32 %v1516, %v1518
      %v1535 = vmul.f32 %v1519, %v1519
      %v1536 = vmul.f32 %v1520, %v1520
      %v1537 = vmul.f32 %v1521, %v1521
      %v1538 = vmul.f32 %v1522, %v1522
      %v1539 = vmul.f32 %v1523, %v1523
      %v1540 = vmul.f32 %v1524, %v1524
      %v1541 = vmul.f32 %v1525, %v1525
      %v1542 = vmul.f32 %v1526, %v1526
      %v1543 = vmul.f32 %v1527, %v1527
      %v1544 = vmul.f32 %v1528, %v1528
      %v1545 = vmul.f32 %v1529, %v1529
      %v1546 = vmul.f32 %v1530, %v1530
      %v1547 = vmul.f32 %v1531, %v1531
      %v1548 = vmul.f32 %v1532, %v1532
      %v1549 = vmul.f32 %v1533, %v1533
      %v1550 = vmul.f32 %v1534, %v1534
      %v1551 = vld [vmem:[#allocation8 + $0x1] sm:$0x1]
      %1552 = vset.pattern.permute.xlu0 1
      %1553 = vperm.xlu0 %1552, %v1421
      %v1554 = vpop.permute.xlu0 %1553
      %1556 = vset.pattern.permute.xlu0 1
      %1557 = vperm.xlu0 %1556, %v1422
      %v1558 = vpop.permute.xlu0 %1557
      %1560 = vset.pattern.permute.xlu0 1
      %1561 = vperm.xlu0 %1560, %v1423
      %v1562 = vpop.permute.xlu0 %1561
      %1564 = vset.pattern.permute.xlu0 1
      %1565 = vperm.xlu0 %1564, %v1424
      %v1566 = vpop.permute.xlu0 %1565
      %1568 = vset.pattern.permute.xlu0 1
      %1569 = vperm.xlu0 %1568, %v1425
      %v1570 = vpop.permute.xlu0 %1569
      %1572 = vset.pattern.permute.xlu0 1
      %1573 = vperm.xlu0 %1572, %v1426
      %v1574 = vpop.permute.xlu0 %1573
      %1576 = vset.pattern.permute.xlu0 1
      %1577 = vperm.xlu0 %1576, %v1427
      %v1578 = vpop.permute.xlu0 %1577
      %1580 = vset.pattern.permute.xlu0 1
      %1581 = vperm.xlu0 %1580, %v1428
      %v1582 = vpop.permute.xlu0 %1581
      %1584 = vset.pattern.permute.xlu0 1
      %1585 = vperm.xlu0 %1584, %v1429
      %v1586 = vpop.permute.xlu0 %1585
      %1588 = vset.pattern.permute.xlu0 1
      %1589 = vperm.xlu0 %1588, %v1430
      %v1590 = vpop.permute.xlu0 %1589
      %1592 = vset.pattern.permute.xlu0 1
      %1593 = vperm.xlu0 %1592, %v1431
      %v1594 = vpop.permute.xlu0 %1593
      %1596 = vset.pattern.permute.xlu0 1
      %1597 = vperm.xlu0 %1596, %v1432
      %v1598 = vpop.permute.xlu0 %1597
      %1600 = vset.pattern.permute.xlu0 1
      %1601 = vperm.xlu0 %1600, %v1433
      %v1602 = vpop.permute.xlu0 %1601
      %1604 = vset.pattern.permute.xlu0 1
      %1605 = vperm.xlu0 %1604, %v1434
      %v1606 = vpop.permute.xlu0 %1605
      %1608 = vset.pattern.permute.xlu0 1
      %1609 = vperm.xlu0 %1608, %v1435
      %v1610 = vpop.permute.xlu0 %1609
      %1612 = vset.pattern.permute.xlu0 1
      %1613 = vperm.xlu0 %1612, %v1436
      %v1614 = vpop.permute.xlu0 %1613
      %v1616 = vperm.slane %v1551, 0
      %v1617 = vsub.f32 %v1554, %v1616
      %v1618 = vsub.f32 %v1558, %v1616
      %v1619 = vsub.f32 %v1562, %v1616
      %v1620 = vsub.f32 %v1566, %v1616
      %v1621 = vsub.f32 %v1570, %v1616
      %v1622 = vsub.f32 %v1574, %v1616
      %v1623 = vsub.f32 %v1578, %v1616
      %v1624 = vsub.f32 %v1582, %v1616
      %v1625 = vsub.f32 %v1586, %v1616
      %v1626 = vsub.f32 %v1590, %v1616
      %v1627 = vsub.f32 %v1594, %v1616
      %v1628 = vsub.f32 %v1598, %v1616
      %v1629 = vsub.f32 %v1602, %v1616
      %v1630 = vsub.f32 %v1606, %v1616
      %v1631 = vsub.f32 %v1610, %v1616
      %v1632 = vsub.f32 %v1614, %v1616
      %v1633 = vmul.f32 %v1617, %v1617
      %v1634 = vmul.f32 %v1618, %v1618
      %v1635 = vmul.f32 %v1619, %v1619
      %v1636 = vmul.f32 %v1620, %v1620
      %v1637 = vmul.f32 %v1621, %v1621
      %v1638 = vmul.f32 %v1622, %v1622
      %v1639 = vmul.f32 %v1623, %v1623
      %v1640 = vmul.f32 %v1624, %v1624
      %v1641 = vmul.f32 %v1625, %v1625
      %v1642 = vmul.f32 %v1626, %v1626
      %v1643 = vmul.f32 %v1627, %v1627
      %v1644 = vmul.f32 %v1628, %v1628
      %v1645 = vmul.f32 %v1629, %v1629
      %v1646 = vmul.f32 %v1630, %v1630
      %v1647 = vmul.f32 %v1631, %v1631
      %v1648 = vmul.f32 %v1632, %v1632
      %v1649 = vadd.f32 %v1535, %v1633
      %v1650 = vadd.f32 %v1536, %v1634
      %v1651 = vadd.f32 %v1537, %v1635
      %v1652 = vadd.f32 %v1538, %v1636
      %v1653 = vadd.f32 %v1539, %v1637
      %v1654 = vadd.f32 %v1540, %v1638
      %v1655 = vadd.f32 %v1541, %v1639
      %v1656 = vadd.f32 %v1542, %v1640
      %v1657 = vadd.f32 %v1543, %v1641
      %v1658 = vadd.f32 %v1544, %v1642
      %v1659 = vadd.f32 %v1545, %v1643
      %v1660 = vadd.f32 %v1546, %v1644
      %v1661 = vadd.f32 %v1547, %v1645
      %v1662 = vadd.f32 %v1548, %v1646
      %v1663 = vadd.f32 %v1549, %v1647
      %v1664 = vadd.f32 %v1550, %v1648
      %v1665 = vld [vmem:[#allocation8 + $0x2] sm:$0x1]
      %1666 = vset.pattern.permute.xlu0 2
      %1667 = vperm.xlu0 %1666, %v1421
      %v1668 = vpop.permute.xlu0 %1667
      %1670 = vset.pattern.permute.xlu0 2
      %1671 = vperm.xlu0 %1670, %v1422
      %v1672 = vpop.permute.xlu0 %1671
      %1674 = vset.pattern.permute.xlu0 2
      %1675 = vperm.xlu0 %1674, %v1423
      %v1676 = vpop.permute.xlu0 %1675
      %1678 = vset.pattern.permute.xlu0 2
      %1679 = vperm.xlu0 %1678, %v1424
      %v1680 = vpop.permute.xlu0 %1679
      %1682 = vset.pattern.permute.xlu0 2
      %1683 = vperm.xlu0 %1682, %v1425
      %v1684 = vpop.permute.xlu0 %1683
      %1686 = vset.pattern.permute.xlu0 2
      %1687 = vperm.xlu0 %1686, %v1426
      %v1688 = vpop.permute.xlu0 %1687
      %1690 = vset.pattern.permute.xlu0 2
      %1691 = vperm.xlu0 %1690, %v1427
      %v1692 = vpop.permute.xlu0 %1691
      %1694 = vset.pattern.permute.xlu0 2
      %1695 = vperm.xlu0 %1694, %v1428
      %v1696 = vpop.permute.xlu0 %1695
      %1698 = vset.pattern.permute.xlu0 2
      %1699 = vperm.xlu0 %1698, %v1429
      %v1700 = vpop.permute.xlu0 %1699
      %1702 = vset.pattern.permute.xlu0 2
      %1703 = vperm.xlu0 %1702, %v1430
      %v1704 = vpop.permute.xlu0 %1703
      %1706 = vset.pattern.permute.xlu0 2
      %1707 = vperm.xlu0 %1706, %v1431
      %v1708 = vpop.permute.xlu0 %1707
      %1710 = vset.pattern.permute.xlu0 2
      %1711 = vperm.xlu0 %1710, %v1432
      %v1712 = vpop.permute.xlu0 %1711
      %1714 = vset.pattern.permute.xlu0 2
      %1715 = vperm.xlu0 %1714, %v1433
      %v1716 = vpop.permute.xlu0 %1715
      %1718 = vset.pattern.permute.xlu0 2
      %1719 = vperm.xlu0 %1718, %v1434
      %v1720 = vpop.permute.xlu0 %1719
      %1722 = vset.pattern.permute.xlu0 2
      %1723 = vperm.xlu0 %1722, %v1435
      %v1724 = vpop.permute.xlu0 %1723
      %1726 = vset.pattern.permute.xlu0 2
      %1727 = vperm.xlu0 %1726, %v1436
      %v1728 = vpop.permute.xlu0 %1727
      %v1730 = vperm.slane %v1665, 0
      %v1731 = vsub.f32 %v1668, %v1730
      %v1732 = vsub.f32 %v1672, %v1730
      %v1733 = vsub.f32 %v1676, %v1730
      %v1734 = vsub.f32 %v1680, %v1730
      %v1735 = vsub.f32 %v1684, %v1730
      %v1736 = vsub.f32 %v1688, %v1730
      %v1737 = vsub.f32 %v1692, %v1730
      %v1738 = vsub.f32 %v1696, %v1730
      %v1739 = vsub.f32 %v1700, %v1730
      %v1740 = vsub.f32 %v1704, %v1730
      %v1741 = vsub.f32 %v1708, %v1730
      %v1742 = vsub.f32 %v1712, %v1730
      %v1743 = vsub.f32 %v1716, %v1730
      %v1744 = vsub.f32 %v1720, %v1730
      %v1745 = vsub.f32 %v1724, %v1730
      %v1746 = vsub.f32 %v1728, %v1730
      %v1747 = vmul.f32 %v1731, %v1731
      %v1748 = vmul.f32 %v1732, %v1732
      %v1749 = vmul.f32 %v1733, %v1733
      %v1750 = vmul.f32 %v1734, %v1734
      %v1751 = vmul.f32 %v1735, %v1735
      %v1752 = vmul.f32 %v1736, %v1736
      %v1753 = vmul.f32 %v1737, %v1737
      %v1754 = vmul.f32 %v1738, %v1738
      %v1755 = vmul.f32 %v1739, %v1739
      %v1756 = vmul.f32 %v1740, %v1740
      %v1757 = vmul.f32 %v1741, %v1741
      %v1758 = vmul.f32 %v1742, %v1742
      %v1759 = vmul.f32 %v1743, %v1743
      %v1760 = vmul.f32 %v1744, %v1744
      %v1761 = vmul.f32 %v1745, %v1745
      %v1762 = vmul.f32 %v1746, %v1746
      %v1763 = vadd.f32 %v1649, %v1747
      %v1764 = vadd.f32 %v1650, %v1748
      %v1765 = vadd.f32 %v1651, %v1749
      %v1766 = vadd.f32 %v1652, %v1750
      %v1767 = vadd.f32 %v1653, %v1751
      %v1768 = vadd.f32 %v1654, %v1752
      %v1769 = vadd.f32 %v1655, %v1753
      %v1770 = vadd.f32 %v1656, %v1754
      %v1771 = vadd.f32 %v1657, %v1755
      %v1772 = vadd.f32 %v1658, %v1756
      %v1773 = vadd.f32 %v1659, %v1757
      %v1774 = vadd.f32 %v1660, %v1758
      %v1775 = vadd.f32 %v1661, %v1759
      %v1776 = vadd.f32 %v1662, %v1760
      %v1777 = vadd.f32 %v1663, %v1761
      %v1778 = vadd.f32 %v1664, %v1762
      %v1779 = vld [vmem:[#allocation2] sm:$0x1]
      %v1780 = vmin.f32 %v1763, %v1767
      %v1781 = vmin.f32 %v1764, %v1768
      %v1782 = vmin.f32 %v1765, %v1769
      %v1783 = vmin.f32 %v1766, %v1770
      %v1784 = vmin.f32 %v1780, %v1771
      %v1785 = vmin.f32 %v1781, %v1772
      %v1786 = vmin.f32 %v1782, %v1773
      %v1787 = vmin.f32 %v1783, %v1774
      %v1788 = vmin.f32 %v1784, %v1775
      %v1789 = vmin.f32 %v1785, %v1776
      %v1790 = vmin.f32 %v1786, %v1777
      %v1791 = vmin.f32 %v1787, %v1778
      %v1792 = vmin.f32 %v1788, %v1789
      %v1793 = vmin.f32 %v1790, %v1791
      %v1794 = vmin.f32 %v1792, %v1793
      %v1795 = vrot.slane %v1794, 4
      %v1796 = vmin.f32 %v1794, %v1795
      %v1797 = vrot.slane %v1796, 2
      %v1798 = vmin.f32 %v1796, %v1797
      %v1799 = vrot.slane %v1798, 1
      %v1800 = vmin.f32 %v1798, %v1799
      %v1801 = vmin.f32 %v1779, %v1800
      %vm1802 = vcmp.lt.s32.totalorder %v305, 128
      %vm1803 = vmand %vm306, %vm1802
      %1804 = vst.msk [vmem:[#allocation2] sm:$0x1] %vm1803, %v1801
      %1805 = vmin.xlane.f32.xlu0 %v1763
      %v1806 = vpop.xlane.xlu0 %1805
      %1807 = vmin.xlane.f32.xlu0 %v1764
      %v1808 = vpop.xlane.xlu0 %1807
      %1809 = vmin.xlane.f32.xlu0 %v1765
      %v1810 = vpop.xlane.xlu0 %1809
      %1811 = vmin.xlane.f32.xlu0 %v1766
      %v1812 = vpop.xlane.xlu0 %1811
      %1813 = vmin.xlane.f32.xlu0 %v1767
      %v1814 = vpop.xlane.xlu0 %1813
      %1815 = vmin.xlane.f32.xlu0 %v1768
      %v1816 = vpop.xlane.xlu0 %1815
      %1817 = vmin.xlane.f32.xlu0 %v1769
      %v1818 = vpop.xlane.xlu0 %1817
      %1819 = vmin.xlane.f32.xlu0 %v1770
      %v1820 = vpop.xlane.xlu0 %1819
      %1821 = vmin.xlane.f32.xlu0 %v1771
      %v1822 = vpop.xlane.xlu0 %1821
      %1823 = vmin.xlane.f32.xlu0 %v1772
      %v1824 = vpop.xlane.xlu0 %1823
      %1825 = vmin.xlane.f32.xlu0 %v1773
      %v1826 = vpop.xlane.xlu0 %1825
      %1827 = vmin.xlane.f32.xlu0 %v1774
      %v1828 = vpop.xlane.xlu0 %1827
      %1829 = vmin.xlane.f32.xlu0 %v1775
      %v1830 = vpop.xlane.xlu0 %1829
      %1831 = vmin.xlane.f32.xlu0 %v1776
      %v1832 = vpop.xlane.xlu0 %1831
      %1833 = vmin.xlane.f32.xlu0 %v1777
      %v1834 = vpop.xlane.xlu0 %1833
      %1835 = vmin.xlane.f32.xlu0 %v1778
      %v1836 = vpop.xlane.xlu0 %1835
      %v1837 = vld [vmem:[%s657] sm:$0xff]
      %v1838 = vld [vmem:[%s657 + $0x8] sm:$0xff]
      %v1839 = vld [vmem:[%s657 + $0x10] sm:$0xff]
      %v1840 = vld [vmem:[%s657 + $0x18] sm:$0xff]
      %v1841 = vld [vmem:[%s657 + $0x20] sm:$0xff]
      %v1842 = vld [vmem:[%s657 + $0x28] sm:$0xff]
      %v1843 = vld [vmem:[%s657 + $0x30] sm:$0xff]
      %v1844 = vld [vmem:[%s657 + $0x38] sm:$0xff]
      %v1845 = vld [vmem:[%s657 + $0x40] sm:$0xff]
      %v1846 = vld [vmem:[%s657 + $0x48] sm:$0xff]
      %v1847 = vld [vmem:[%s657 + $0x50] sm:$0xff]
      %v1848 = vld [vmem:[%s657 + $0x58] sm:$0xff]
      %v1849 = vld [vmem:[%s657 + $0x60] sm:$0xff]
      %v1850 = vld [vmem:[%s657 + $0x68] sm:$0xff]
      %v1851 = vld [vmem:[%s657 + $0x70] sm:$0xff]
      %v1852 = vld [vmem:[%s657 + $0x78] sm:$0xff]
      %s1853 = scalar_lea.vmem [#allocation8], 4
      %v1854 = vld [vmem:[%s1853] sm:$0x1]
      %1856 = vset.pattern.permute.xlu0 0
      %1857 = vperm.xlu0 %1856, %v1837
      %v1858 = vpop.permute.xlu0 %1857
      %1861 = vset.pattern.permute.xlu0 0
      %1862 = vperm.xlu0 %1861, %v1838
      %v1863 = vpop.permute.xlu0 %1862
      %1866 = vset.pattern.permute.xlu0 0
      %1867 = vperm.xlu0 %1866, %v1839
      %v1868 = vpop.permute.xlu0 %1867
      %1871 = vset.pattern.permute.xlu0 0
      %1872 = vperm.xlu0 %1871, %v1840
      %v1873 = vpop.permute.xlu0 %1872
      %1876 = vset.pattern.permute.xlu0 0
      %1877 = vperm.xlu0 %1876, %v1841
      %v1878 = vpop.permute.xlu0 %1877
      %1881 = vset.pattern.permute.xlu0 0
      %1882 = vperm.xlu0 %1881, %v1842
      %v1883 = vpop.permute.xlu0 %1882
      %1886 = vset.pattern.permute.xlu0 0
      %1887 = vperm.xlu0 %1886, %v1843
      %v1888 = vpop.permute.xlu0 %1887
      %1891 = vset.pattern.permute.xlu0 0
      %1892 = vperm.xlu0 %1891, %v1844
      %v1893 = vpop.permute.xlu0 %1892
      %1896 = vset.pattern.permute.xlu0 0
      %1897 = vperm.xlu0 %1896, %v1845
      %v1898 = vpop.permute.xlu0 %1897
      %1901 = vset.pattern.permute.xlu0 0
      %1902 = vperm.xlu0 %1901, %v1846
      %v1903 = vpop.permute.xlu0 %1902
      %1906 = vset.pattern.permute.xlu0 0
      %1907 = vperm.xlu0 %1906, %v1847
      %v1908 = vpop.permute.xlu0 %1907
      %1911 = vset.pattern.permute.xlu0 0
      %1912 = vperm.xlu0 %1911, %v1848
      %v1913 = vpop.permute.xlu0 %1912
      %1916 = vset.pattern.permute.xlu0 0
      %1917 = vperm.xlu0 %1916, %v1849
      %v1918 = vpop.permute.xlu0 %1917
      %1921 = vset.pattern.permute.xlu0 0
      %1922 = vperm.xlu0 %1921, %v1850
      %v1923 = vpop.permute.xlu0 %1922
      %1926 = vset.pattern.permute.xlu0 0
      %1927 = vperm.xlu0 %1926, %v1851
      %v1928 = vpop.permute.xlu0 %1927
      %1931 = vset.pattern.permute.xlu0 0
      %1932 = vperm.xlu0 %1931, %v1852
      %v1933 = vpop.permute.xlu0 %1932
      %v1935 = vperm.slane %v1854, 0
      %v1936 = vsub.f32 %v1858, %v1935
      %v1937 = vsub.f32 %v1863, %v1935
      %v1938 = vsub.f32 %v1868, %v1935
      %v1939 = vsub.f32 %v1873, %v1935
      %v1940 = vsub.f32 %v1878, %v1935
      %v1941 = vsub.f32 %v1883, %v1935
      %v1942 = vsub.f32 %v1888, %v1935
      %v1943 = vsub.f32 %v1893, %v1935
      %v1944 = vsub.f32 %v1898, %v1935
      %v1945 = vsub.f32 %v1903, %v1935
      %v1946 = vsub.f32 %v1908, %v1935
      %v1947 = vsub.f32 %v1913, %v1935
      %v1948 = vsub.f32 %v1918, %v1935
      %v1949 = vsub.f32 %v1923, %v1935
      %v1950 = vsub.f32 %v1928, %v1935
      %v1951 = vsub.f32 %v1933, %v1935
      %v1952 = vmul.f32 %v1936, %v1936
      %v1953 = vmul.f32 %v1937, %v1937
      %v1954 = vmul.f32 %v1938, %v1938
      %v1955 = vmul.f32 %v1939, %v1939
      %v1956 = vmul.f32 %v1940, %v1940
      %v1957 = vmul.f32 %v1941, %v1941
      %v1958 = vmul.f32 %v1942, %v1942
      %v1959 = vmul.f32 %v1943, %v1943
      %v1960 = vmul.f32 %v1944, %v1944
      %v1961 = vmul.f32 %v1945, %v1945
      %v1962 = vmul.f32 %v1946, %v1946
      %v1963 = vmul.f32 %v1947, %v1947
      %v1964 = vmul.f32 %v1948, %v1948
      %v1965 = vmul.f32 %v1949, %v1949
      %v1966 = vmul.f32 %v1950, %v1950
      %v1967 = vmul.f32 %v1951, %v1951
      %v1968 = vld [vmem:[%s1853 + $0x1] sm:$0x1]
      %1969 = vset.pattern.permute.xlu0 1
      %1970 = vperm.xlu0 %1969, %v1837
      %v1971 = vpop.permute.xlu0 %1970
      %1973 = vset.pattern.permute.xlu0 1
      %1974 = vperm.xlu0 %1973, %v1838
      %v1975 = vpop.permute.xlu0 %1974
      %1977 = vset.pattern.permute.xlu0 1
      %1978 = vperm.xlu0 %1977, %v1839
      %v1979 = vpop.permute.xlu0 %1978
      %1981 = vset.pattern.permute.xlu0 1
      %1982 = vperm.xlu0 %1981, %v1840
      %v1983 = vpop.permute.xlu0 %1982
      %1985 = vset.pattern.permute.xlu0 1
      %1986 = vperm.xlu0 %1985, %v1841
      %v1987 = vpop.permute.xlu0 %1986
      %1989 = vset.pattern.permute.xlu0 1
      %1990 = vperm.xlu0 %1989, %v1842
      %v1991 = vpop.permute.xlu0 %1990
      %1993 = vset.pattern.permute.xlu0 1
      %1994 = vperm.xlu0 %1993, %v1843
      %v1995 = vpop.permute.xlu0 %1994
      %1997 = vset.pattern.permute.xlu0 1
      %1998 = vperm.xlu0 %1997, %v1844
      %v1999 = vpop.permute.xlu0 %1998
      %2001 = vset.pattern.permute.xlu0 1
      %2002 = vperm.xlu0 %2001, %v1845
      %v2003 = vpop.permute.xlu0 %2002
      %2005 = vset.pattern.permute.xlu0 1
      %2006 = vperm.xlu0 %2005, %v1846
      %v2007 = vpop.permute.xlu0 %2006
      %2009 = vset.pattern.permute.xlu0 1
      %2010 = vperm.xlu0 %2009, %v1847
      %v2011 = vpop.permute.xlu0 %2010
      %2013 = vset.pattern.permute.xlu0 1
      %2014 = vperm.xlu0 %2013, %v1848
      %v2015 = vpop.permute.xlu0 %2014
      %2017 = vset.pattern.permute.xlu0 1
      %2018 = vperm.xlu0 %2017, %v1849
      %v2019 = vpop.permute.xlu0 %2018
      %2021 = vset.pattern.permute.xlu0 1
      %2022 = vperm.xlu0 %2021, %v1850
      %v2023 = vpop.permute.xlu0 %2022
      %2025 = vset.pattern.permute.xlu0 1
      %2026 = vperm.xlu0 %2025, %v1851
      %v2027 = vpop.permute.xlu0 %2026
      %2029 = vset.pattern.permute.xlu0 1
      %2030 = vperm.xlu0 %2029, %v1852
      %v2031 = vpop.permute.xlu0 %2030
      %v2033 = vperm.slane %v1968, 0
      %v2034 = vsub.f32 %v1971, %v2033
      %v2035 = vsub.f32 %v1975, %v2033
      %v2036 = vsub.f32 %v1979, %v2033
      %v2037 = vsub.f32 %v1983, %v2033
      %v2038 = vsub.f32 %v1987, %v2033
      %v2039 = vsub.f32 %v1991, %v2033
      %v2040 = vsub.f32 %v1995, %v2033
      %v2041 = vsub.f32 %v1999, %v2033
      %v2042 = vsub.f32 %v2003, %v2033
      %v2043 = vsub.f32 %v2007, %v2033
      %v2044 = vsub.f32 %v2011, %v2033
      %v2045 = vsub.f32 %v2015, %v2033
      %v2046 = vsub.f32 %v2019, %v2033
      %v2047 = vsub.f32 %v2023, %v2033
      %v2048 = vsub.f32 %v2027, %v2033
      %v2049 = vsub.f32 %v2031, %v2033
      %v2050 = vmul.f32 %v2034, %v2034
      %v2051 = vmul.f32 %v2035, %v2035
      %v2052 = vmul.f32 %v2036, %v2036
      %v2053 = vmul.f32 %v2037, %v2037
      %v2054 = vmul.f32 %v2038, %v2038
      %v2055 = vmul.f32 %v2039, %v2039
      %v2056 = vmul.f32 %v2040, %v2040
      %v2057 = vmul.f32 %v2041, %v2041
      %v2058 = vmul.f32 %v2042, %v2042
      %v2059 = vmul.f32 %v2043, %v2043
      %v2060 = vmul.f32 %v2044, %v2044
      %v2061 = vmul.f32 %v2045, %v2045
      %v2062 = vmul.f32 %v2046, %v2046
      %v2063 = vmul.f32 %v2047, %v2047
      %v2064 = vmul.f32 %v2048, %v2048
      %v2065 = vmul.f32 %v2049, %v2049
      %v2066 = vadd.f32 %v1952, %v2050
      %v2067 = vadd.f32 %v1953, %v2051
      %v2068 = vadd.f32 %v1954, %v2052
      %v2069 = vadd.f32 %v1955, %v2053
      %v2070 = vadd.f32 %v1956, %v2054
      %v2071 = vadd.f32 %v1957, %v2055
      %v2072 = vadd.f32 %v1958, %v2056
      %v2073 = vadd.f32 %v1959, %v2057
      %v2074 = vadd.f32 %v1960, %v2058
      %v2075 = vadd.f32 %v1961, %v2059
      %v2076 = vadd.f32 %v1962, %v2060
      %v2077 = vadd.f32 %v1963, %v2061
      %v2078 = vadd.f32 %v1964, %v2062
      %v2079 = vadd.f32 %v1965, %v2063
      %v2080 = vadd.f32 %v1966, %v2064
      %v2081 = vadd.f32 %v1967, %v2065
      %v2082 = vld [vmem:[%s1853 + $0x2] sm:$0x1]
      %2083 = vset.pattern.permute.xlu0 2
      %2084 = vperm.xlu0 %2083, %v1837
      %v2085 = vpop.permute.xlu0 %2084
      %2087 = vset.pattern.permute.xlu0 2
      %2088 = vperm.xlu0 %2087, %v1838
      %v2089 = vpop.permute.xlu0 %2088
      %2091 = vset.pattern.permute.xlu0 2
      %2092 = vperm.xlu0 %2091, %v1839
      %v2093 = vpop.permute.xlu0 %2092
      %2095 = vset.pattern.permute.xlu0 2
      %2096 = vperm.xlu0 %2095, %v1840
      %v2097 = vpop.permute.xlu0 %2096
      %2099 = vset.pattern.permute.xlu0 2
      %2100 = vperm.xlu0 %2099, %v1841
      %v2101 = vpop.permute.xlu0 %2100
      %2103 = vset.pattern.permute.xlu0 2
      %2104 = vperm.xlu0 %2103, %v1842
      %v2105 = vpop.permute.xlu0 %2104
      %2107 = vset.pattern.permute.xlu0 2
      %2108 = vperm.xlu0 %2107, %v1843
      %v2109 = vpop.permute.xlu0 %2108
      %2111 = vset.pattern.permute.xlu0 2
      %2112 = vperm.xlu0 %2111, %v1844
      %v2113 = vpop.permute.xlu0 %2112
      %2115 = vset.pattern.permute.xlu0 2
      %2116 = vperm.xlu0 %2115, %v1845
      %v2117 = vpop.permute.xlu0 %2116
      %2119 = vset.pattern.permute.xlu0 2
      %2120 = vperm.xlu0 %2119, %v1846
      %v2121 = vpop.permute.xlu0 %2120
      %2123 = vset.pattern.permute.xlu0 2
      %2124 = vperm.xlu0 %2123, %v1847
      %v2125 = vpop.permute.xlu0 %2124
      %2127 = vset.pattern.permute.xlu0 2
      %2128 = vperm.xlu0 %2127, %v1848
      %v2129 = vpop.permute.xlu0 %2128
      %2131 = vset.pattern.permute.xlu0 2
      %2132 = vperm.xlu0 %2131, %v1849
      %v2133 = vpop.permute.xlu0 %2132
      %2135 = vset.pattern.permute.xlu0 2
      %2136 = vperm.xlu0 %2135, %v1850
      %v2137 = vpop.permute.xlu0 %2136
      %2139 = vset.pattern.permute.xlu0 2
      %2140 = vperm.xlu0 %2139, %v1851
      %v2141 = vpop.permute.xlu0 %2140
      %2143 = vset.pattern.permute.xlu0 2
      %2144 = vperm.xlu0 %2143, %v1852
      %v2145 = vpop.permute.xlu0 %2144
      %v2147 = vperm.slane %v2082, 0
      %v2148 = vsub.f32 %v2085, %v2147
      %v2149 = vsub.f32 %v2089, %v2147
      %v2150 = vsub.f32 %v2093, %v2147
      %v2151 = vsub.f32 %v2097, %v2147
      %v2152 = vsub.f32 %v2101, %v2147
      %v2153 = vsub.f32 %v2105, %v2147
      %v2154 = vsub.f32 %v2109, %v2147
      %v2155 = vsub.f32 %v2113, %v2147
      %v2156 = vsub.f32 %v2117, %v2147
      %v2157 = vsub.f32 %v2121, %v2147
      %v2158 = vsub.f32 %v2125, %v2147
      %v2159 = vsub.f32 %v2129, %v2147
      %v2160 = vsub.f32 %v2133, %v2147
      %v2161 = vsub.f32 %v2137, %v2147
      %v2162 = vsub.f32 %v2141, %v2147
      %v2163 = vsub.f32 %v2145, %v2147
      %v2164 = vmul.f32 %v2148, %v2148
      %v2165 = vmul.f32 %v2149, %v2149
      %v2166 = vmul.f32 %v2150, %v2150
      %v2167 = vmul.f32 %v2151, %v2151
      %v2168 = vmul.f32 %v2152, %v2152
      %v2169 = vmul.f32 %v2153, %v2153
      %v2170 = vmul.f32 %v2154, %v2154
      %v2171 = vmul.f32 %v2155, %v2155
      %v2172 = vmul.f32 %v2156, %v2156
      %v2173 = vmul.f32 %v2157, %v2157
      %v2174 = vmul.f32 %v2158, %v2158
      %v2175 = vmul.f32 %v2159, %v2159
      %v2176 = vmul.f32 %v2160, %v2160
      %v2177 = vmul.f32 %v2161, %v2161
      %v2178 = vmul.f32 %v2162, %v2162
      %v2179 = vmul.f32 %v2163, %v2163
      %v2180 = vadd.f32 %v2066, %v2164
      %v2181 = vadd.f32 %v2067, %v2165
      %v2182 = vadd.f32 %v2068, %v2166
      %v2183 = vadd.f32 %v2069, %v2167
      %v2184 = vadd.f32 %v2070, %v2168
      %v2185 = vadd.f32 %v2071, %v2169
      %v2186 = vadd.f32 %v2072, %v2170
      %v2187 = vadd.f32 %v2073, %v2171
      %v2188 = vadd.f32 %v2074, %v2172
      %v2189 = vadd.f32 %v2075, %v2173
      %v2190 = vadd.f32 %v2076, %v2174
      %v2191 = vadd.f32 %v2077, %v2175
      %v2192 = vadd.f32 %v2078, %v2176
      %v2193 = vadd.f32 %v2079, %v2177
      %v2194 = vadd.f32 %v2080, %v2178
      %v2195 = vadd.f32 %v2081, %v2179
      %s2196 = scalar_lea.vmem [#allocation2], 1
      %v2197 = vld [vmem:[%s2196] sm:$0x1]
      %v2198 = vmin.f32 %v2180, %v2184
      %v2199 = vmin.f32 %v2181, %v2185
      %v2200 = vmin.f32 %v2182, %v2186
      %v2201 = vmin.f32 %v2183, %v2187
      %v2202 = vmin.f32 %v2198, %v2188
      %v2203 = vmin.f32 %v2199, %v2189
      %v2204 = vmin.f32 %v2200, %v2190
      %v2205 = vmin.f32 %v2201, %v2191
      %v2206 = vmin.f32 %v2202, %v2192
      %v2207 = vmin.f32 %v2203, %v2193
      %v2208 = vmin.f32 %v2204, %v2194
      %v2209 = vmin.f32 %v2205, %v2195
      %v2210 = vmin.f32 %v2206, %v2207
      %v2211 = vmin.f32 %v2208, %v2209
      %v2212 = vmin.f32 %v2210, %v2211
      %v2213 = vrot.slane %v2212, 4
      %v2214 = vmin.f32 %v2212, %v2213
      %v2215 = vrot.slane %v2214, 2
      %v2216 = vmin.f32 %v2214, %v2215
      %v2217 = vrot.slane %v2216, 1
      %v2218 = vmin.f32 %v2216, %v2217
      %v2219 = vmin.f32 %v2197, %v2218
      %2220 = vst.msk [vmem:[%s2196] sm:$0x1] %vm1803, %v2219
      %2221 = vmin.xlane.f32.xlu0 %v2180
      %v2222 = vpop.xlane.xlu0 %2221
      %2223 = vmin.xlane.f32.xlu0 %v2181
      %v2224 = vpop.xlane.xlu0 %2223
      %2225 = vmin.xlane.f32.xlu0 %v2182
      %v2226 = vpop.xlane.xlu0 %2225
      %2227 = vmin.xlane.f32.xlu0 %v2183
      %v2228 = vpop.xlane.xlu0 %2227
      %2229 = vmin.xlane.f32.xlu0 %v2184
      %v2230 = vpop.xlane.xlu0 %2229
      %2231 = vmin.xlane.f32.xlu0 %v2185
      %v2232 = vpop.xlane.xlu0 %2231
      %2233 = vmin.xlane.f32.xlu0 %v2186
      %v2234 = vpop.xlane.xlu0 %2233
      %2235 = vmin.xlane.f32.xlu0 %v2187
      %v2236 = vpop.xlane.xlu0 %2235
      %2237 = vmin.xlane.f32.xlu0 %v2188
      %v2238 = vpop.xlane.xlu0 %2237
      %2239 = vmin.xlane.f32.xlu0 %v2189
      %v2240 = vpop.xlane.xlu0 %2239
      %2241 = vmin.xlane.f32.xlu0 %v2190
      %v2242 = vpop.xlane.xlu0 %2241
      %2243 = vmin.xlane.f32.xlu0 %v2191
      %v2244 = vpop.xlane.xlu0 %2243
      %2245 = vmin.xlane.f32.xlu0 %v2192
      %v2246 = vpop.xlane.xlu0 %2245
      %2247 = vmin.xlane.f32.xlu0 %v2193
      %v2248 = vpop.xlane.xlu0 %2247
      %2249 = vmin.xlane.f32.xlu0 %v2194
      %v2250 = vpop.xlane.xlu0 %2249
      %2251 = vmin.xlane.f32.xlu0 %v2195
      %v2252 = vpop.xlane.xlu0 %2251
      %v2253 = vmin.f32 %v1806, %v2222
      %v2254 = vmin.f32 %v1808, %v2224
      %v2255 = vmin.f32 %v1810, %v2226
      %v2256 = vmin.f32 %v1812, %v2228
      %v2257 = vmin.f32 %v1814, %v2230
      %v2258 = vmin.f32 %v1816, %v2232
      %v2259 = vmin.f32 %v1818, %v2234
      %v2260 = vmin.f32 %v1820, %v2236
      %v2261 = vmin.f32 %v1822, %v2238
      %v2262 = vmin.f32 %v1824, %v2240
      %v2263 = vmin.f32 %v1826, %v2242
      %v2264 = vmin.f32 %v1828, %v2244
      %v2265 = vmin.f32 %v1830, %v2246
      %v2266 = vmin.f32 %v1832, %v2248
      %v2267 = vmin.f32 %v1834, %v2250
      %v2268 = vmin.f32 %v1836, %v2252
      %v2269 = vsel %vm658, %v2253, 0.0
      %v2270 = vsel %vm658, %v2254, 0.0
      %v2271 = vadd.f32 %v2269, %v2270
      %v2272 = vsel %vm658, %v2255, 0.0
      %v2273 = vadd.f32 %v2271, %v2272
      %v2274 = vsel %vm658, %v2256, 0.0
      %v2275 = vadd.f32 %v2273, %v2274
      %v2276 = vsel %vm658, %v2257, 0.0
      %v2277 = vadd.f32 %v2275, %v2276
      %v2278 = vsel %vm658, %v2258, 0.0
      %v2279 = vadd.f32 %v2277, %v2278
      %v2280 = vsel %vm658, %v2259, 0.0
      %v2281 = vadd.f32 %v2279, %v2280
      %v2282 = vsel %vm658, %v2260, 0.0
      %v2283 = vadd.f32 %v2281, %v2282
      %v2284 = vsel %vm658, %v2261, 0.0
      %v2285 = vadd.f32 %v2283, %v2284
      %v2286 = vsel %vm658, %v2262, 0.0
      %v2287 = vadd.f32 %v2285, %v2286
      %v2288 = vsel %vm658, %v2263, 0.0
      %v2289 = vadd.f32 %v2287, %v2288
      %v2290 = vsel %vm658, %v2264, 0.0
      %v2291 = vadd.f32 %v2289, %v2290
      %v2292 = vsel %vm658, %v2265, 0.0
      %v2293 = vadd.f32 %v2291, %v2292
      %v2294 = vsel %vm658, %v2266, 0.0
      %v2295 = vadd.f32 %v2293, %v2294
      %v2296 = vsel %vm658, %v2267, 0.0
      %v2297 = vadd.f32 %v2295, %v2296
      %v2298 = vsel %vm658, %v2268, 0.0
      %v2299 = vadd.f32 %v2297, %v2298
      %2300 = vadd.xlane.f32.xlu0 %v2299
      %v2301 = vpop.xlane.xlu0 %2300
      %v2302 = vrot.slane %v2301, 4
      %v2303 = vadd.f32 %v2301, %v2302
      %v2304 = vrot.slane %v2303, 2
      %v2305 = vadd.f32 %v2303, %v2304
      %v2306 = vrot.slane %v2305, 1
      %v2307 = vadd.f32 %v2305, %v2306
      %s2308 = vtos %v2307
      %s2309 = sadd.f32 %s403, %s2308
      %s2310 = sadd.f32 %s404, %s714
      %s2311 = sadd.f32 %s405, %s1067
      %s2312 = sadd.f32 %s406, %s1420
    $region34: #{tpu_custom_call.1} parent=1 // loop_footer
      %s402 = sadd.s32 1, %s398
    $region35: #{tpu_custom_call.1} parent=1 // loop_footer_branch
      %397 = sbr.rel target = $region31
    $region36: #{tpu_custom_call.1} parent=1 // loop_exit
      _
    %s2313 = smul.f32 %s404, 0.00390625
    %s2314 = smul.f32 %s405, 0.00390625
    %s2315 = smul.f32 %s406, 0.00390625
    %s2316 = ssub.f32 %s327, %s2313
    %s2317 = smul.f32 %s2316, %s2316
    %s2318 = ssub.f32 %s361, %s2314
    %s2319 = smul.f32 %s2318, %s2318
    %s2320 = sadd.f32 %s2317, %s2319
    %s2321 = ssub.f32 %s395, %s2315
    %s2322 = smul.f32 %s2321, %s2321
    %s2323 = sadd.f32 %s2320, %s2322
    %s2324 = smul.f32 %s2323, 0.33333334
    %v2325 = vld [vmem:[#allocation2] sm:$0x3]
    %v2327 = vperm.slane %v2325, 0
    %v2328 = vperm.slane %v2325, 1
    %v2331 = vsel %vm133, %v2327, 0.0
    %v2332 = vsel %vm133, %v2328, 0.0
    %v2333 = vadd.f32 %v2331, %v2332
    %2334 = vadd.xlane.f32.xlu0 %v2333
    %v2335 = vpop.xlane.xlu0 %2334
    %v2336 = vrot.slane %v2335, 4
    %v2337 = vadd.f32 %v2335, %v2336
    %v2338 = vrot.slane %v2337, 2
    %v2339 = vadd.f32 %v2337, %v2338
    %v2340 = vrot.slane %v2339, 1
    %v2341 = vadd.f32 %v2339, %v2340
    %s2342 = vtos %v2341
    %s2343 = smul.f32 %s403, 0.00390625
    %s2344 = smul.f32 %s2342, 0.00390625
    %s2345 = sadd.f32 %s2343, %s2344
    %v2346 = vstv %s2345
    %vm2347 = vcmask 0
    %2348 = vst.msk [vmem:[#allocation9] sm:$0x1] %vm2347, %v2346
    %v2349 = vstv %s2324
    %2350 = vst.msk [vmem:[#allocation11] sm:$0x1] %vm2347, %v2349
    // Predicated region
    $region37: #{tpu_custom_call.1} parent=1 // pred_check
      _
    $region38: #{tpu_custom_call.1} parent=1 // pred_check_branch
      %2352 = sbr.rel (0) target = $region40
    $region39: #{tpu_custom_call.1} parent=1 // pred_region
      _
    $region40: #{tpu_custom_call.1} parent=1 // pred_fallthru
      _
    // Predicated region
    $region41: #{tpu_custom_call.1} parent=1 // pred_check
      _
    $region42: #{tpu_custom_call.1} parent=1 // pred_check_branch
      %2354 = sbr.rel (0) target = $region44
    $region43: #{tpu_custom_call.1} parent=1 // pred_region
      %2356 = vsyncadd [#allocation5], 0
      %s2358 = sshll.u32 [#allocation8], 4
      %s2359 = int_to_ptr.vmem [resolvable:$true] %s2358
      %s2360 = sshll.u32 %s6, 4
      %s2361 = int_to_ptr.hbm [resolvable:$true] %s2360
      %2363 = dma.vmem_to_hbm [thread:$0]  %s2359, 128, %s2361, [#allocation5]
    $region44: #{tpu_custom_call.1} parent=1 // pred_fallthru
      _
    // Predicated region
    $region45: #{tpu_custom_call.1} parent=1 // pred_check
      _
    $region46: #{tpu_custom_call.1} parent=1 // pred_check_branch
      %2365 = sbr.rel (0) target = $region48
    $region47: #{tpu_custom_call.1} parent=1 // pred_region
      %2367 = vsyncadd [#allocation10], 0
      %s2369 = sshll.u32 [#allocation9], 4
      %s2370 = int_to_ptr.vmem [resolvable:$true] %s2369
      %s2371 = sshll.u32 %s7, 4
      %s2372 = int_to_ptr.hbm [resolvable:$true] %s2371
      %2374 = dma.vmem_to_hbm [thread:$0]  %s2370, 16, %s2372, [#allocation10]
    $region48: #{tpu_custom_call.1} parent=1 // pred_fallthru
      _
    // Predicated region
    $region49: #{tpu_custom_call.1} parent=1 // pred_check
      _
    $region50: #{tpu_custom_call.1} parent=1 // pred_check_branch
      %2376 = sbr.rel (0) target = $region52
    $region51: #{tpu_custom_call.1} parent=1 // pred_region
      %2378 = vsyncadd [#allocation10], 0
      %s2380 = sshll.u32 [#allocation11], 4
      %s2381 = int_to_ptr.vmem [resolvable:$true] %s2380
      %s2382 = sshll.u32 %s8, 4
      %s2383 = int_to_ptr.hbm [resolvable:$true] %s2382
      %2385 = dma.vmem_to_hbm [thread:$0]  %s2381, 16, %s2383, [#allocation10]
    $region52: #{tpu_custom_call.1} parent=1 // pred_fallthru
      _
    // Predicated region
    $region53: #{tpu_custom_call.1} parent=1 // pred_check
      _
    $region54: #{tpu_custom_call.1} parent=1 // pred_check_branch
      %2387 = sbr.rel (0) target = $region56
    $region55: #{tpu_custom_call.1} parent=1 // pred_region
      _
    $region56: #{tpu_custom_call.1} parent=1 // pred_fallthru
      _
    // Predicated region
    $region57: #{tpu_custom_call.1} parent=1 // pred_check
      _
    $region58: #{tpu_custom_call.1} parent=1 // pred_check_branch
      %2389 = sbr.rel (0) target = $region60
    $region59: #{tpu_custom_call.1} parent=1 // pred_region
      %2391 = dma.done [#allocation5], 128
    $region60: #{tpu_custom_call.1} parent=1 // pred_fallthru
      _
    // Predicated region
    $region61: #{tpu_custom_call.1} parent=1 // pred_check
      _
    $region62: #{tpu_custom_call.1} parent=1 // pred_check_branch
      %2393 = sbr.rel (0) target = $region64
    $region63: #{tpu_custom_call.1} parent=1 // pred_region
      %2395 = dma.done [#allocation10], 16
    $region64: #{tpu_custom_call.1} parent=1 // pred_fallthru
      _
    // Predicated region
    $region65: #{tpu_custom_call.1} parent=1 // pred_check
      _
    $region66: #{tpu_custom_call.1} parent=1 // pred_check_branch
      %2397 = sbr.rel (0) target = $region68
    $region67: #{tpu_custom_call.1} parent=1 // pred_region
      %2399 = dma.done [#allocation10], 16
    $region68: #{tpu_custom_call.1} parent=1 // pred_fallthru
      _
    %2400 = vsyncpa [#allocation4], 1
    %2401 = vsyncpa [#allocation5], 1
    %2402 = vsyncpa [#allocation10], 1
    %2403 = vsyncpa [#allocation6], 1

</llo_original>
